<compile_context>
chip_gen: v7x
topology: tpu7x:2x2x1
jax: 0.10.0
libtpu: 0.0.40
codegen_flags: <defaults>
</compile_context>

<pallas_src>
import functools
import math

import numpy as np
import jax
import jax.numpy as jnp
from jax import lax
from jax.experimental import pallas as pl
from jax.experimental.pallas import tpu as pltpu

EPS = 1e-5
ROPE_BASE = 10000.0
MASK_VALUE = -1e30   # additive causal mask; safe only because scores stay f32


# ----------------------------------------------------------------------------
# Kernel: one grid step = one sequence (S rows of the packed (B*S, D) slab).
# LayerNorm -> interleaved RoPE -> fused QK / V projections -> per-sequence
# causal attention (heads batched) -> single out-proj matmul -> residual.
# ----------------------------------------------------------------------------
def transformer_layer_kernel(x_ref, gamma_ref, beta_ref,
                             cos_ref, sino_ref, sine_ref,
                             wqk_ref, bqk_ref, wv_ref, bv_ref,
                             wo_ref, bo_ref, o_ref,
                             *, num_heads, approx_recip):
    f32 = jnp.float32
    x = x_ref[...]                              # (S, D) f32
    S, D = x.shape
    H = num_heads
    hd = D // H
    cd = wqk_ref.dtype                          # MXU operand dtype (bf16 fast / f32 precise)

    # ---- LayerNorm (f32 VPU math on every TPU generation) ----
    mu = jnp.mean(x, axis=-1, keepdims=True)
    xc = x - mu
    var = jnp.mean(xc * xc, axis=-1, keepdims=True)
    xn = xc * lax.rsqrt(var + EPS) * gamma_ref[...] + beta_ref[...]

    # ---- Interleaved RoPE via two XLU lane rotations (no DxD swap matmul) ----
    # pair-swap(x)[2i] = -x[2i+1], pair-swap(x)[2i+1] = x[2i]; the sign and the
    # even/odd lane selection are pre-folded into the masked sin tables and the
    # circular-wrap lanes are multiplied by zero.
    r_p = pltpu.roll(xn, shift=1, axis=1)       # r_p[:, j] = xn[:, j-1]
    r_m = pltpu.roll(xn, shift=D - 1, axis=1)   # r_m[:, j] = xn[:, j+1]
    xr = xn * cos_ref[...] + r_p * sino_ref[...] + r_m * sine_ref[...]

    # ---- Fused, lane-dense projections (f32 accumulation on the MXU) ----
    # Q||K in one (S,D)x(D,2D) matmul; V in one (S,D)x(D,D) matmul.
    qk = jnp.dot(xr.astype(cd), wqk_ref[...], preferred_element_type=f32) + bqk_ref[...]
    v = jnp.dot(xn.astype(cd), wv_ref[...], preferred_element_type=f32) + bv_ref[...]
    qk_c = qk.astype(cd)
    v_c = v.astype(cd)

    # ---- Head split: static lane slices stacked on a new leading batch axis.
    # (Avoids in-kernel non-minor transposes; O(S*D) copies, negligible vs matmuls.)
    q_h = jnp.stack([qk_c[:, h * hd:(h + 1) * hd] for h in range(H)], axis=0)        # (H,S,hd)
    k_h = jnp.stack([qk_c[:, D + h * hd:D + (h + 1) * hd] for h in range(H)], axis=0)
    v_h = jnp.stack([v_c[:, h * hd:(h + 1) * hd] for h in range(H)], axis=0)

    # ---- Causal mask built in-kernel from iota (no mask table DMA) ----
    row = lax.broadcasted_iota(jnp.int32, (S, S), 0)
    col = lax.broadcasted_iota(jnp.int32, (S, S), 1)
    causal_bias = jnp.where(col <= row, 0.0, MASK_VALUE).astype(f32)                 # (S, S)

    # ---- Per-sequence causal attention, all heads in one batched contraction ----
    s = jnp.einsum('hqe,hke->hqk', q_h, k_h, preferred_element_type=f32)
    s = s + causal_bias[None]
    m = jnp.max(s, axis=-1, keepdims=True)
    e = jnp.exp(s - m)
    denom = jnp.sum(e, axis=-1, keepdims=True)                                       # (H,S,1)

    attn = jnp.einsum('hqk,hke->hqe', e.astype(cd), v_h,
                      preferred_element_type=f32)                                    # (H,S,hd)
    # Normalise after the PV matmul: H*S*hd multiplies instead of H*S*S; EUP recip.
    attn = attn * pl.reciprocal(denom, approx=approx_recip)

    # ---- Output projection: ONE lane-dense (S,D)x(D,D) matmul over all heads ----
    attn2 = jnp.concatenate([attn[h] for h in range(H)], axis=-1)                    # (S, D)
    out = jnp.dot(attn2.astype(cd), wo_ref[...], preferred_element_type=f32) + bo_ref[...]

    # Dropout is identity at inference.
    # TODO(synk): training-mode dropout (p=0.1) would need pltpu.prng_seed/prng_random_bits.
    o_ref[...] = (x + out).astype(o_ref.dtype)                                       # lane-dense store


# ----------------------------------------------------------------------------
# Host-side parameter preparation (done once, outside the per-call path).
# ----------------------------------------------------------------------------
def prepare_transformer_params(gamma, beta, in_proj_w, in_proj_b,
                               out_proj_w, out_proj_b, *, num_heads,
                               seq_len, mxu_dtype=jnp.bfloat16):
    D = gamma.shape[0]
    H = num_heads
    hd = D // H
    scale = 1.0 / math.sqrt(hd)

    wq_t = in_proj_w[0 * D:1 * D].T * scale     # fold attention scale into Q proj
    wk_t = in_proj_w[1 * D:2 * D].T
    wv_t = in_proj_w[2 * D:3 * D].T
    bq = in_proj_b[0 * D:1 * D] * scale
    bk = in_proj_b[1 * D:2 * D]
    bv = in_proj_b[2 * D:3 * D]

    params = dict(
        gamma=gamma.reshape(1, D).astype(jnp.float32),
        beta=beta.reshape(1, D).astype(jnp.float32),
        wqk=jnp.concatenate([wq_t, wk_t], axis=1).astype(mxu_dtype),      # (D, 2D)
        bqk=jnp.concatenate([bq, bk]).reshape(1, 2 * D).astype(jnp.float32),
        wv=wv_t.astype(mxu_dtype),                                        # (D, D)
        bv=bv.reshape(1, D).astype(jnp.float32),
        wo=out_proj_w.T.astype(mxu_dtype),                                # (D, D)
        bo=out_proj_b.reshape(1, D).astype(jnp.float32),
    )

    # RoPE tables for one sequence (S, D): cos full; sin split into an odd-lane
    # (+sin) table paired with roll(+1) and an even-lane (-sin) table paired with
    # roll(-1), so the kernel needs only two rotations and three FMAs.
    half = hd // 2
    inv_freq = 1.0 / (ROPE_BASE ** (np.arange(0, hd, 2)[:half].astype(np.float64) / hd))
    pos = np.arange(seq_len).astype(np.float64)
    ang = pos[:, None] * inv_freq[None, :]                               # (S, hd/2)
    cos_f = np.tile(np.repeat(np.cos(ang), 2, axis=1), (1, H))           # (S, D)
    sin_f = np.tile(np.repeat(np.sin(ang), 2, axis=1), (1, H))
    odd = (np.arange(D) % 2).astype(np.float64)                          # 1 on odd lanes
    params['cos'] = jnp.asarray(cos_f, jnp.float32)
    params['sin_odd'] = jnp.asarray(sin_f * odd, jnp.float32)
    params['sin_even'] = jnp.asarray(-sin_f * (1.0 - odd), jnp.float32)
    return params


# ----------------------------------------------------------------------------
# pallas_call wrapper.
# ----------------------------------------------------------------------------
def transformer_layer(x, params, *, num_heads, approx_softmax_recip=True,
                      vmem_limit_bytes=64 * 1024 * 1024):
    B, S, D = x.shape
    # Lane/sublane density checks (v5e has a single vector-store slot; masked
    # partial stores from non-dense blocks are disproportionately expensive).
    assert D % 128 == 0, "d_res must be a multiple of 128 (lane width)"
    assert S % 8 == 0, "seq_len must be a multiple of 8 (f32 sublanes)"
    assert D % num_heads == 0 and (D // num_heads) % 2 == 0
    assert params['cos'].shape == (S, D)

    x2 = x.reshape(B * S, D)          # pack (B, S) into the matmul M dimension

    kernel = functools.partial(transformer_layer_kernel,
                               num_heads=num_heads,
                               approx_recip=approx_softmax_recip)

    # Constant operands (weights / biases / RoPE tables) use a constant index
    # map, so their DMA is only issued once across the grid.  (pipeline_mode=
    # pl.Buffered(1) would additionally drop their second pipeline buffer --
    # worth enabling on v7x's 64 MiB VMEM at production D.)
    full = lambda a: pl.BlockSpec(a.shape, lambda i: (0,) * a.ndim)
    p = params

    out2 = pl.pallas_call(
        kernel,
        out_shape=jax.ShapeDtypeStruct((B * S, D), x.dtype),
        grid=(B,),                    # one sequence per step: attention cost is
                                      # B*S^2, and >= 2 "parallel" steps feed
                                      # both v7x TensorCores / overlap DMA.
        in_specs=[
            pl.BlockSpec((S, D), lambda i: (i, 0)),        # activations
            full(p['gamma']), full(p['beta']),
            full(p['cos']), full(p['sin_odd']), full(p['sin_even']),
            full(p['wqk']), full(p['bqk']),
            full(p['wv']), full(p['bv']),
            full(p['wo']), full(p['bo']),
        ],
        out_specs=pl.BlockSpec((S, D), lambda i: (i, 0)),  # lane-dense output slab
        compiler_params=pltpu.CompilerParams(
            dimension_semantics=("parallel",),
            # v6e (128 MiB physical) can raise this toward ~100 MiB for larger
            # blocks; v7x (64 MiB) should stay lower and K-tile weights instead.
            vmem_limit_bytes=vmem_limit_bytes,
        ),
    )(x2, p['gamma'], p['beta'], p['cos'], p['sin_odd'], p['sin_even'],
      p['wqk'], p['bqk'], p['wv'], p['bv'], p['wo'], p['bo'])
    # TODO(synk): for production D >= 1024 on v7x, K-tile the (D,2D)/(D,D)
    # weights over a trailing "arbitrary" grid axis with a VMEM f32 accumulator
    # instead of keeping them fully resident (plus flash-tile attention over KV
    # blocks for long S).
    return out2.reshape(B, S, D)


# ----------------------------------------------------------------------------
# Pure-JAX reference (mirrors the PyTorch module at eval time) for validation.
# ----------------------------------------------------------------------------
def reference(x, gamma, beta, in_proj_w, in_proj_b, out_proj_w, out_proj_b, num_heads):
    B, S, D = x.shape
    hd = D // num_heads
    mu = x.mean(-1, keepdims=True)
    var = ((x - mu) ** 2).mean(-1, keepdims=True)
    xn = (x - mu) / jnp.sqrt(var + EPS) * gamma + beta

    half = hd // 2
    theta = 1.0 / (ROPE_BASE ** (jnp.arange(0, hd, 2)[:half].astype(jnp.float32) / hd))
    ang = jnp.arange(S, dtype=jnp.float32)[:, None] * theta[None, :]
    c, s = jnp.cos(ang), jnp.sin(ang)

    def rope(t):
        t4 = t.reshape(B, S, num_heads, half, 2)
        cc = c[None, :, None, :]
        ss = s[None, :, None, :]
        out = jnp.stack([t4[..., 0] * cc - t4[..., 1] * ss,
                         t4[..., 1] * cc + t4[..., 0] * ss], axis=-1)
        return out.reshape(B, S, D)

    wq, wk, wv = in_proj_w[:D], in_proj_w[D:2 * D], in_proj_w[2 * D:]
    bq, bk, bv = in_proj_b[:D], in_proj_b[D:2 * D], in_proj_b[2 * D:]
    q = rope(xn) @ wq.T + bq
    k = rope(xn) @ wk.T + bk
    v = xn @ wv.T + bv
    qh = q.reshape(B, S, num_heads, hd).transpose(0, 2, 1, 3)
    kh = k.reshape(B, S, num_heads, hd).transpose(0, 2, 1, 3)
    vh = v.reshape(B, S, num_heads, hd).transpose(0, 2, 1, 3)
    sc = jnp.einsum('bhqd,bhkd->bhqk', qh, kh) / math.sqrt(hd)
    mask = jnp.tril(jnp.ones((S, S), bool))
    sc = jnp.where(mask, sc, -jnp.inf)
    p = jax.nn.softmax(sc, axis=-1)
    o = jnp.einsum('bhqk,bhkd->bhqd', p, vh).transpose(0, 2, 1, 3).reshape(B, S, D)
    return x + (o @ out_proj_w.T + out_proj_b)


if __name__ == "__main__":
    B, S, D, H = 2, 8, 128, 4     # batch, seq, d_res, num_heads  (head_dim = 32)

    key = jax.random.PRNGKey(0)
    kx, kg, kb, kw1, kb1, kw2, kb2 = jax.random.split(key, 7)
    x = jax.random.normal(kx, (B, S, D), jnp.float32)

    gamma = 1.0 + 0.1 * jax.random.normal(kg, (D,), jnp.float32)
    beta = 0.05 * jax.random.normal(kb, (D,), jnp.float32)
    in_proj_w = jax.random.normal(kw1, (3 * D, D), jnp.float32) * 0.05
    in_proj_b = jax.random.normal(kb1, (3 * D,), jnp.float32) * 0.02
    out_proj_w = jax.random.normal(kw2, (D, D), jnp.float32) * 0.05
    out_proj_b = jax.random.normal(kb2, (D,), jnp.float32) * 0.02

    y_ref = reference(x, gamma, beta, in_proj_w, in_proj_b, out_proj_w, out_proj_b, H)

    # 1) precise config: f32 MXU operands + exact reciprocal -> validates semantics.
    prep_f32 = prepare_transformer_params(
        gamma, beta, in_proj_w, in_proj_b, out_proj_w, out_proj_b,
        num_heads=H, seq_len=S, mxu_dtype=jnp.float32)
    y_f32 = jax.block_until_ready(
        transformer_layer(x, prep_f32, num_heads=H, approx_softmax_recip=False))
    np.testing.assert_allclose(np.asarray(y_f32), np.asarray(y_ref),
                               rtol=1e-4, atol=1e-4)

    # 2) fast config: bf16 MXU operands (f32 accumulation) + approx reciprocal.
    prep_bf16 = prepare_transformer_params(
        gamma, beta, in_proj_w, in_proj_b, out_proj_w, out_proj_b,
        num_heads=H, seq_len=S, mxu_dtype=jnp.bfloat16)
    y_bf16 = jax.block_until_ready(
        transformer_layer(x, prep_bf16, num_heads=H, approx_softmax_recip=True))
    np.testing.assert_allclose(np.asarray(y_bf16), np.asarray(y_ref),
                               rtol=2e-2, atol=2e-2)

    print("KERNEL_OK")
</pallas_src>

<mosaic_0001>
module attributes {stable_mosaic.version = 11 : i64} {
  func.func @transformer_layer_kernel(%arg0: i32, %arg1: memref<8x128xf32, #tpu.memory_space<vmem>>, %arg2: memref<1x128xf32, #tpu.memory_space<vmem>>, %arg3: memref<1x128xf32, #tpu.memory_space<vmem>>, %arg4: memref<8x128xf32, #tpu.memory_space<vmem>>, %arg5: memref<8x128xf32, #tpu.memory_space<vmem>>, %arg6: memref<8x128xf32, #tpu.memory_space<vmem>>, %arg7: memref<128x256xf32, #tpu.memory_space<vmem>>, %arg8: memref<1x256xf32, #tpu.memory_space<vmem>>, %arg9: memref<128x128xf32, #tpu.memory_space<vmem>>, %arg10: memref<1x128xf32, #tpu.memory_space<vmem>>, %arg11: memref<128x128xf32, #tpu.memory_space<vmem>>, %arg12: memref<1x128xf32, #tpu.memory_space<vmem>>, %arg13: memref<8x128xf32, #tpu.memory_space<vmem>>) attributes {dimension_semantics = [#tpu.dimension_semantics<parallel>], iteration_bounds = array<i64: 2>, scalar_prefetch = 0 : i64, scratch_operands = 0 : i64, tpu.core_type = #tpu.core_type<tc>, window_params = [{transform_indices = @transform_0, window_bounds = array<i64: 8, 128>}, {pipeline_mode = #tpu.pipeline_mode<synchronous>, transform_indices = @transform_1, window_bounds = array<i64: 1, 128>}, {pipeline_mode = #tpu.pipeline_mode<synchronous>, transform_indices = @transform_2, window_bounds = array<i64: 1, 128>}, {pipeline_mode = #tpu.pipeline_mode<synchronous>, transform_indices = @transform_3, window_bounds = array<i64: 8, 128>}, {pipeline_mode = #tpu.pipeline_mode<synchronous>, transform_indices = @transform_4, window_bounds = array<i64: 8, 128>}, {pipeline_mode = #tpu.pipeline_mode<synchronous>, transform_indices = @transform_5, window_bounds = array<i64: 8, 128>}, {pipeline_mode = #tpu.pipeline_mode<synchronous>, transform_indices = @transform_6, window_bounds = array<i64: 128, 256>}, {pipeline_mode = #tpu.pipeline_mode<synchronous>, transform_indices = @transform_7, window_bounds = array<i64: 1, 256>}, {pipeline_mode = #tpu.pipeline_mode<synchronous>, transform_indices = @transform_8, window_bounds = array<i64: 128, 128>}, {pipeline_mode = #tpu.pipeline_mode<synchronous>, transform_indices = @transform_9, window_bounds = array<i64: 1, 128>}, {pipeline_mode = #tpu.pipeline_mode<synchronous>, transform_indices = @transform_10, window_bounds = array<i64: 128, 128>}, {pipeline_mode = #tpu.pipeline_mode<synchronous>, transform_indices = @transform_11, window_bounds = array<i64: 1, 128>}, {transform_indices = @transform_12, window_bounds = array<i64: 8, 128>}]} {
    %c0 = arith.constant 0 : index
    %c0_0 = arith.constant 0 : index
    %0 = vector.load %arg1[%c0, %c0_0] : memref<8x128xf32, #tpu.memory_space<vmem>>, vector<8x128xf32>
    %cst = arith.constant dense<0.000000e+00> : vector<8xf32>
    %1 = vector.multi_reduction <add>, %0, %cst [1] : vector<8x128xf32> to vector<8xf32>
    %2 = vector.shape_cast %1 : vector<8xf32> to vector<8x1xf32>
    %cst_1 = arith.constant 1.280000e+02 : f32
    %3 = vector.broadcast %cst_1 : f32 to vector<8x1xf32>
    %4 = arith.divf %2, %3 : vector<8x1xf32>
    %5 = vector.broadcast %4 : vector<8x1xf32> to vector<8x128xf32>
    %6 = arith.subf %0, %5 : vector<8x128xf32>
    %7 = arith.mulf %6, %6 : vector<8x128xf32>
    %cst_2 = arith.constant dense<0.000000e+00> : vector<8xf32>
    %8 = vector.multi_reduction <add>, %7, %cst_2 [1] : vector<8x128xf32> to vector<8xf32>
    %9 = vector.shape_cast %8 : vector<8xf32> to vector<8x1xf32>
    %cst_3 = arith.constant 1.280000e+02 : f32
    %10 = vector.broadcast %cst_3 : f32 to vector<8x1xf32>
    %11 = arith.divf %9, %10 : vector<8x1xf32>
    %cst_4 = arith.constant 9.99999974E-6 : f32
    %12 = vector.broadcast %cst_4 : f32 to vector<8x1xf32>
    %13 = arith.addf %11, %12 : vector<8x1xf32>
    %14 = math.rsqrt %13 : vector<8x1xf32>
    %15 = vector.broadcast %14 : vector<8x1xf32> to vector<8x128xf32>
    %16 = arith.mulf %6, %15 : vector<8x128xf32>
    %c0_5 = arith.constant 0 : index
    %c0_6 = arith.constant 0 : index
    %17 = vector.load %arg2[%c0_5, %c0_6] : memref<1x128xf32, #tpu.memory_space<vmem>>, vector<1x128xf32>
    %18 = vector.broadcast %17 : vector<1x128xf32> to vector<8x128xf32>
    %19 = arith.mulf %16, %18 : vector<8x128xf32>
    %c0_7 = arith.constant 0 : index
    %c0_8 = arith.constant 0 : index
    %20 = vector.load %arg3[%c0_7, %c0_8] : memref<1x128xf32, #tpu.memory_space<vmem>>, vector<1x128xf32>
    %21 = vector.broadcast %20 : vector<1x128xf32> to vector<8x128xf32>
    %22 = arith.addf %19, %21 : vector<8x128xf32>
    %c1_i32 = arith.constant 1 : i32
    %23 = tpu.dynamic_rotate %22 by %c1_i32 dim 1 : vector<8x128xf32>, i32 -> vector<8x128xf32>
    %c127_i32 = arith.constant 127 : i32
    %24 = tpu.dynamic_rotate %22 by %c127_i32 dim 1 : vector<8x128xf32>, i32 -> vector<8x128xf32>
    %c0_9 = arith.constant 0 : index
    %c0_10 = arith.constant 0 : index
    %25 = vector.load %arg4[%c0_9, %c0_10] : memref<8x128xf32, #tpu.memory_space<vmem>>, vector<8x128xf32>
    %26 = arith.mulf %22, %25 : vector<8x128xf32>
    %c0_11 = arith.constant 0 : index
    %c0_12 = arith.constant 0 : index
    %27 = vector.load %arg5[%c0_11, %c0_12] : memref<8x128xf32, #tpu.memory_space<vmem>>, vector<8x128xf32>
    %28 = arith.mulf %23, %27 : vector<8x128xf32>
    %29 = arith.addf %26, %28 : vector<8x128xf32>
    %c0_13 = arith.constant 0 : index
    %c0_14 = arith.constant 0 : index
    %30 = vector.load %arg6[%c0_13, %c0_14] : memref<8x128xf32, #tpu.memory_space<vmem>>, vector<8x128xf32>
    %31 = arith.mulf %24, %30 : vector<8x128xf32>
    %32 = arith.addf %29, %31 : vector<8x128xf32>
    %c0_15 = arith.constant 0 : index
    %c0_16 = arith.constant 0 : index
    %33 = vector.load %arg7[%c0_15, %c0_16] : memref<128x256xf32, #tpu.memory_space<vmem>>, vector<128x256xf32>
    %cst_17 = arith.constant dense<0.000000e+00> : vector<8x256xf32>
    %34 = tpu.matmul %32, %33, %cst_17 {dimension_numbers = #tpu.dot_dimension_numbers<[1], [0], [0], [1], [0, 0, 1, 1], [], []>} : vector<8x128xf32>, vector<128x256xf32>, vector<8x256xf32> -> vector<8x256xf32>
    %c0_18 = arith.constant 0 : index
    %c0_19 = arith.constant 0 : index
    %35 = vector.load %arg8[%c0_18, %c0_19] : memref<1x256xf32, #tpu.memory_space<vmem>>, vector<1x256xf32>
    %36 = vector.broadcast %35 : vector<1x256xf32> to vector<8x256xf32>
    %37 = arith.addf %34, %36 : vector<8x256xf32>
    %c0_20 = arith.constant 0 : index
    %c0_21 = arith.constant 0 : index
    %38 = vector.load %arg9[%c0_20, %c0_21] : memref<128x128xf32, #tpu.memory_space<vmem>>, vector<128x128xf32>
    %cst_22 = arith.constant dense<0.000000e+00> : vector<8x128xf32>
    %39 = tpu.matmul %22, %38, %cst_22 {dimension_numbers = #tpu.dot_dimension_numbers<[1], [0], [0], [1], [0, 0, 1, 1], [], []>} : vector<8x128xf32>, vector<128x128xf32>, vector<8x128xf32> -> vector<8x128xf32>
    %c0_23 = arith.constant 0 : index
    %c0_24 = arith.constant 0 : index
    %40 = vector.load %arg10[%c0_23, %c0_24] : memref<1x128xf32, #tpu.memory_space<vmem>>, vector<1x128xf32>
    %41 = vector.broadcast %40 : vector<1x128xf32> to vector<8x128xf32>
    %42 = arith.addf %39, %41 : vector<8x128xf32>
    %43 = vector.extract_strided_slice %37 {offsets = [0, 0], sizes = [8, 32], strides = [1, 1]} : vector<8x256xf32> to vector<8x32xf32>
    %44 = vector.extract_strided_slice %37 {offsets = [0, 32], sizes = [8, 32], strides = [1, 1]} : vector<8x256xf32> to vector<8x32xf32>
    %45 = vector.extract_strided_slice %37 {offsets = [0, 64], sizes = [8, 32], strides = [1, 1]} : vector<8x256xf32> to vector<8x32xf32>
    %46 = vector.extract_strided_slice %37 {offsets = [0, 96], sizes = [8, 32], strides = [1, 1]} : vector<8x256xf32> to vector<8x32xf32>
    %47 = vector.shape_cast %43 : vector<8x32xf32> to vector<1x8x32xf32>
    %48 = vector.shape_cast %44 : vector<8x32xf32> to vector<1x8x32xf32>
    %49 = vector.shape_cast %45 : vector<8x32xf32> to vector<1x8x32xf32>
    %50 = vector.shape_cast %46 : vector<8x32xf32> to vector<1x8x32xf32>
    %51 = tpu.concatenate %47, %48, %49, %50 in 0 : vector<1x8x32xf32>, vector<1x8x32xf32>, vector<1x8x32xf32>, vector<1x8x32xf32> -> vector<4x8x32xf32>
    %52 = vector.extract_strided_slice %37 {offsets = [0, 128], sizes = [8, 32], strides = [1, 1]} : vector<8x256xf32> to vector<8x32xf32>
    %53 = vector.extract_strided_slice %37 {offsets = [0, 160], sizes = [8, 32], strides = [1, 1]} : vector<8x256xf32> to vector<8x32xf32>
    %54 = vector.extract_strided_slice %37 {offsets = [0, 192], sizes = [8, 32], strides = [1, 1]} : vector<8x256xf32> to vector<8x32xf32>
    %55 = vector.extract_strided_slice %37 {offsets = [0, 224], sizes = [8, 32], strides = [1, 1]} : vector<8x256xf32> to vector<8x32xf32>
    %56 = vector.shape_cast %52 : vector<8x32xf32> to vector<1x8x32xf32>
    %57 = vector.shape_cast %53 : vector<8x32xf32> to vector<1x8x32xf32>
    %58 = vector.shape_cast %54 : vector<8x32xf32> to vector<1x8x32xf32>
    %59 = vector.shape_cast %55 : vector<8x32xf32> to vector<1x8x32xf32>
    %60 = tpu.concatenate %56, %57, %58, %59 in 0 : vector<1x8x32xf32>, vector<1x8x32xf32>, vector<1x8x32xf32>, vector<1x8x32xf32> -> vector<4x8x32xf32>
    %61 = vector.extract_strided_slice %42 {offsets = [0, 0], sizes = [8, 32], strides = [1, 1]} : vector<8x128xf32> to vector<8x32xf32>
    %62 = vector.extract_strided_slice %42 {offsets = [0, 32], sizes = [8, 32], strides = [1, 1]} : vector<8x128xf32> to vector<8x32xf32>
    %63 = vector.extract_strided_slice %42 {offsets = [0, 64], sizes = [8, 32], strides = [1, 1]} : vector<8x128xf32> to vector<8x32xf32>
    %64 = vector.extract_strided_slice %42 {offsets = [0, 96], sizes = [8, 32], strides = [1, 1]} : vector<8x128xf32> to vector<8x32xf32>
    %65 = vector.shape_cast %61 : vector<8x32xf32> to vector<1x8x32xf32>
    %66 = vector.shape_cast %62 : vector<8x32xf32> to vector<1x8x32xf32>
    %67 = vector.shape_cast %63 : vector<8x32xf32> to vector<1x8x32xf32>
    %68 = vector.shape_cast %64 : vector<8x32xf32> to vector<1x8x32xf32>
    %69 = tpu.concatenate %65, %66, %67, %68 in 0 : vector<1x8x32xf32>, vector<1x8x32xf32>, vector<1x8x32xf32>, vector<1x8x32xf32> -> vector<4x8x32xf32>
    %70 = tpu.iota {dimensions = array<i32: 0>} : vector<8x8xi32>
    %71 = tpu.iota {dimensions = array<i32: 1>} : vector<8x8xi32>
    %72 = arith.cmpi sle, %71, %70 : vector<8x8xi32>
    %cst_25 = arith.constant 0.000000e+00 : f32
    %cst_26 = arith.constant -1.000000e+30 : f32
    %73 = vector.broadcast %cst_25 : f32 to vector<8x8xf32>
    %74 = vector.broadcast %cst_26 : f32 to vector<8x8xf32>
    %75 = arith.select %72, %73, %74 : vector<8x8xi1>, vector<8x8xf32>
    "tpu.trace_start"() <{level = 10 : i32, message = "hqe,hke->hqk"}> : () -> ()
    %cst_27 = arith.constant dense<0.000000e+00> : vector<4x8x8xf32>
    %76 = tpu.matmul %51, %60, %cst_27 {dimension_numbers = #tpu.dot_dimension_numbers<[2], [2], [1], [1], [0, 0, 0, 1, 1, 1], [0], [0]>} : vector<4x8x32xf32>, vector<4x8x32xf32>, vector<4x8x8xf32> -> vector<4x8x8xf32>
    "tpu.trace_stop"() : () -> ()
    %77 = vector.shape_cast %75 : vector<8x8xf32> to vector<1x8x8xf32>
    %78 = vector.broadcast %77 : vector<1x8x8xf32> to vector<4x8x8xf32>
    %79 = arith.addf %76, %78 : vector<4x8x8xf32>
    %cst_28 = arith.constant dense<0xFF800000> : vector<4x8xf32>
    %80 = vector.multi_reduction <maximumf>, %79, %cst_28 [2] : vector<4x8x8xf32> to vector<4x8xf32>
    %81 = vector.shape_cast %80 : vector<4x8xf32> to vector<4x8x1xf32>
    %82 = vector.broadcast %81 : vector<4x8x1xf32> to vector<4x8x8xf32>
    %83 = arith.subf %79, %82 : vector<4x8x8xf32>
    %84 = math.exp %83 : vector<4x8x8xf32>
    %cst_29 = arith.constant dense<0.000000e+00> : vector<4x8xf32>
    %85 = vector.multi_reduction <add>, %84, %cst_29 [2] : vector<4x8x8xf32> to vector<4x8xf32>
    %86 = vector.shape_cast %85 : vector<4x8xf32> to vector<4x8x1xf32>
    "tpu.trace_start"() <{level = 10 : i32, message = "hqk,hke->hqe"}> : () -> ()
    %cst_30 = arith.constant dense<0.000000e+00> : vector<4x8x32xf32>
    %87 = tpu.matmul %84, %69, %cst_30 {dimension_numbers = #tpu.dot_dimension_numbers<[2], [1], [1], [2], [0, 0, 0, 1, 1, 2], [0], [0]>} : vector<4x8x8xf32>, vector<4x8x32xf32>, vector<4x8x32xf32> -> vector<4x8x32xf32>
    "tpu.trace_stop"() : () -> ()
    %88 = tpu.reciprocal %86 : vector<4x8x1xf32> -> vector<4x8x1xf32>
    %89 = vector.broadcast %88 : vector<4x8x1xf32> to vector<4x8x32xf32>
    %90 = arith.mulf %87, %89 : vector<4x8x32xf32>
    %91 = vector.extract_strided_slice %90 {offsets = [0, 0, 0], sizes = [1, 8, 32], strides = [1, 1, 1]} : vector<4x8x32xf32> to vector<1x8x32xf32>
    %92 = vector.shape_cast %91 : vector<1x8x32xf32> to vector<8x32xf32>
    %93 = vector.extract_strided_slice %90 {offsets = [1, 0, 0], sizes = [1, 8, 32], strides = [1, 1, 1]} : vector<4x8x32xf32> to vector<1x8x32xf32>
    %94 = vector.shape_cast %93 : vector<1x8x32xf32> to vector<8x32xf32>
    %95 = vector.extract_strided_slice %90 {offsets = [2, 0, 0], sizes = [1, 8, 32], strides = [1, 1, 1]} : vector<4x8x32xf32> to vector<1x8x32xf32>
    %96 = vector.shape_cast %95 : vector<1x8x32xf32> to vector<8x32xf32>
    %97 = vector.extract_strided_slice %90 {offsets = [3, 0, 0], sizes = [1, 8, 32], strides = [1, 1, 1]} : vector<4x8x32xf32> to vector<1x8x32xf32>
    %98 = vector.shape_cast %97 : vector<1x8x32xf32> to vector<8x32xf32>
    %99 = tpu.concatenate %92, %94, %96, %98 in 1 : vector<8x32xf32>, vector<8x32xf32>, vector<8x32xf32>, vector<8x32xf32> -> vector<8x128xf32>
    %c0_31 = arith.constant 0 : index
    %c0_32 = arith.constant 0 : index
    %100 = vector.load %arg11[%c0_31, %c0_32] : memref<128x128xf32, #tpu.memory_space<vmem>>, vector<128x128xf32>
    %cst_33 = arith.constant dense<0.000000e+00> : vector<8x128xf32>
    %101 = tpu.matmul %99, %100, %cst_33 {dimension_numbers = #tpu.dot_dimension_numbers<[1], [0], [0], [1], [0, 0, 1, 1], [], []>} : vector<8x128xf32>, vector<128x128xf32>, vector<8x128xf32> -> vector<8x128xf32>
    %c0_34 = arith.constant 0 : index
    %c0_35 = arith.constant 0 : index
    %102 = vector.load %arg12[%c0_34, %c0_35] : memref<1x128xf32, #tpu.memory_space<vmem>>, vector<1x128xf32>
    %103 = vector.broadcast %102 : vector<1x128xf32> to vector<8x128xf32>
    %104 = arith.addf %101, %103 : vector<8x128xf32>
    %105 = arith.addf %0, %104 : vector<8x128xf32>
    %c0_36 = arith.constant 0 : index
    %c0_37 = arith.constant 0 : index
    %106 = vector.load %arg13[%c0_36, %c0_37] : memref<8x128xf32, #tpu.memory_space<vmem>>, vector<8x128xf32>
    tpu.vector_store %arg13[%c0_36, %c0_37], %105 {strides = array<i32>} : memref<8x128xf32, #tpu.memory_space<vmem>>, vector<8x128xf32>,
    return
  }
  func.func @transform_0(%arg0: i32) -> (i32, i32) {
    %c0_i32 = arith.constant 0 : i32
    %c0_i32_0 = arith.constant 0 : i32
    return %arg0, %c0_i32 : i32, i32
  }
  func.func @transform_1(%arg0: i32) -> (i32, i32) {
    %c0_i32 = arith.constant 0 : i32
    %c0_i32_0 = arith.constant 0 : i32
    %c0_i32_1 = arith.constant 0 : i32
    return %c0_i32, %c0_i32_0 : i32, i32
  }
  func.func @transform_2(%arg0: i32) -> (i32, i32) {
    %c0_i32 = arith.constant 0 : i32
    %c0_i32_0 = arith.constant 0 : i32
    %c0_i32_1 = arith.constant 0 : i32
    return %c0_i32, %c0_i32_0 : i32, i32
  }
  func.func @transform_3(%arg0: i32) -> (i32, i32) {
    %c0_i32 = arith.constant 0 : i32
    %c0_i32_0 = arith.constant 0 : i32
    %c0_i32_1 = arith.constant 0 : i32
    return %c0_i32, %c0_i32_0 : i32, i32
  }
  func.func @transform_4(%arg0: i32) -> (i32, i32) {
    %c0_i32 = arith.constant 0 : i32
    %c0_i32_0 = arith.constant 0 : i32
    %c0_i32_1 = arith.constant 0 : i32
    return %c0_i32, %c0_i32_0 : i32, i32
  }
  func.func @transform_5(%arg0: i32) -> (i32, i32) {
    %c0_i32 = arith.constant 0 : i32
    %c0_i32_0 = arith.constant 0 : i32
    %c0_i32_1 = arith.constant 0 : i32
    return %c0_i32, %c0_i32_0 : i32, i32
  }
  func.func @transform_6(%arg0: i32) -> (i32, i32) {
    %c0_i32 = arith.constant 0 : i32
    %c0_i32_0 = arith.constant 0 : i32
    %c0_i32_1 = arith.constant 0 : i32
    return %c0_i32, %c0_i32_0 : i32, i32
  }
  func.func @transform_7(%arg0: i32) -> (i32, i32) {
    %c0_i32 = arith.constant 0 : i32
    %c0_i32_0 = arith.constant 0 : i32
    %c0_i32_1 = arith.constant 0 : i32
    return %c0_i32, %c0_i32_0 : i32, i32
  }
  func.func @transform_8(%arg0: i32) -> (i32, i32) {
    %c0_i32 = arith.constant 0 : i32
    %c0_i32_0 = arith.constant 0 : i32
    %c0_i32_1 = arith.constant 0 : i32
    return %c0_i32, %c0_i32_0 : i32, i32
  }
  func.func @transform_9(%arg0: i32) -> (i32, i32) {
    %c0_i32 = arith.constant 0 : i32
    %c0_i32_0 = arith.constant 0 : i32
    %c0_i32_1 = arith.constant 0 : i32
    return %c0_i32, %c0_i32_0 : i32, i32
  }
  func.func @transform_10(%arg0: i32) -> (i32, i32) {
    %c0_i32 = arith.constant 0 : i32
    %c0_i32_0 = arith.constant 0 : i32
    %c0_i32_1 = arith.constant 0 : i32
    return %c0_i32, %c0_i32_0 : i32, i32
  }
  func.func @transform_11(%arg0: i32) -> (i32, i32) {
    %c0_i32 = arith.constant 0 : i32
    %c0_i32_0 = arith.constant 0 : i32
    %c0_i32_1 = arith.constant 0 : i32
    return %c0_i32, %c0_i32_0 : i32, i32
  }
  func.func @transform_12(%arg0: i32) -> (i32, i32) {
    %c0_i32 = arith.constant 0 : i32
    %c0_i32_0 = arith.constant 0 : i32
    return %arg0, %c0_i32 : i32, i32
  }
}

</mosaic_0001>

<llo_original>
// kernel: tpu_custom_call.1
$region0: #{tpu_custom_call.1}
  #allocation0 [shape = 'u32[]', space=smem, size = 0x4, offset = 0x4, fixed_abs, tag = 'smem constant byte address 0x4 - core index']
  #allocation1 [shape = 'u32[144,128]{1,0:T(1,128)}', space=vmem, size = 0x12000, scoped, tag = 'internal scratch']
  %s0 = inlined_call_operand.hbm [shape: f32[16,128], index: 0, kind: input, shape index: {}]
  %s1 = inlined_call_operand.hbm [shape: f32[1,128], index: 1, kind: input, shape index: {}]
  %s2 = inlined_call_operand.hbm [shape: f32[1,128], index: 2, kind: input, shape index: {}]
  %s3 = inlined_call_operand.hbm [shape: f32[8,128], index: 3, kind: input, shape index: {}]
  %s4 = inlined_call_operand.hbm [shape: f32[8,128], index: 4, kind: input, shape index: {}]
  %s5 = inlined_call_operand.hbm [shape: f32[8,128], index: 5, kind: input, shape index: {}]
  %s6 = inlined_call_operand.hbm [shape: f32[128,256], index: 6, kind: input, shape index: {}]
  %s7 = inlined_call_operand.hbm [shape: f32[1,256], index: 7, kind: input, shape index: {}]
  %s8 = inlined_call_operand.hbm [shape: f32[128,128], index: 8, kind: input, shape index: {}]
  %s9 = inlined_call_operand.hbm [shape: f32[1,128], index: 9, kind: input, shape index: {}]
  %s10 = inlined_call_operand.hbm [shape: f32[128,128], index: 10, kind: input, shape index: {}]
  %s11 = inlined_call_operand.hbm [shape: f32[1,128], index: 11, kind: input, shape index: {}]
  %s12 = inlined_call_operand.hbm [shape: f32[16,128], index: 12, kind: output, shape index: {}]
  %s13 = sld [smem:[#allocation0]]
  $region129: #{tpu_custom_call.1} parent=0
    _
  %s15 = ssub.s32 1, %s13
  %s16 = scalar_select 0, %s15, %s13
  $region1: #{tpu_custom_call.1} parent=0
    #allocation2 [shape = 'u8[8192]{0}', space=vmem, size = 0x2000, scoped, tag = 'input window, operand 0']
    #allocation3 [shape = 's32[2]{0}', space=sflag, size = 0x8, scoped, tag = 'scoped memory for tpu_custom_call.1']
    #allocation4 [shape = 's32[2]{0}', space=sflag, size = 0x8, scoped, tag = 'scoped memory for tpu_custom_call.1']
    #allocation5 [shape = 'u8[512]{0}', space=vmem, size = 0x400, scoped, tag = 'input window, operand 1, single buffered']
    #allocation6 [shape = 's32[1]{0}', space=sflag, size = 0x4, scoped, tag = 'scoped memory for tpu_custom_call.1']
    #allocation7 [shape = 'u8[512]{0}', space=vmem, size = 0x400, scoped, tag = 'input window, operand 2, single buffered']
    #allocation8 [shape = 'u8[4096]{0}', space=vmem, size = 0x1000, scoped, tag = 'input window, operand 3, single buffered']
    #allocation9 [shape = 's32[1]{0}', space=sflag, size = 0x4, scoped, tag = 'scoped memory for tpu_custom_call.1']
    #allocation10 [shape = 'u8[4096]{0}', space=vmem, size = 0x1000, scoped, tag = 'input window, operand 4, single buffered']
    #allocation11 [shape = 'u8[4096]{0}', space=vmem, size = 0x1000, scoped, tag = 'input window, operand 5, single buffered']
    #allocation12 [shape = 's32[1]{0}', space=sflag, size = 0x4, scoped, tag = 'scoped memory for tpu_custom_call.1']
    #allocation13 [shape = 'u8[131072]{0}', space=vmem, size = 0x20000, scoped, tag = 'input window, operand 6, single buffered']
    #allocation14 [shape = 'u8[1024]{0}', space=vmem, size = 0x400, scoped, tag = 'input window, operand 7, single buffered']
    #allocation15 [shape = 's32[1]{0}', space=sflag, size = 0x4, scoped, tag = 'scoped memory for tpu_custom_call.1']
    #allocation16 [shape = 'u8[65536]{0}', space=vmem, size = 0x10000, scoped, tag = 'input window, operand 8, single buffered']
    #allocation17 [shape = 'u8[512]{0}', space=vmem, size = 0x400, scoped, tag = 'input window, operand 9, single buffered']
    #allocation18 [shape = 's32[1]{0}', space=sflag, size = 0x4, scoped, tag = 'scoped memory for tpu_custom_call.1']
    #allocation19 [shape = 'u8[65536]{0}', space=vmem, size = 0x10000, scoped, tag = 'input window, operand 10, single buffered']
    #allocation20 [shape = 'u8[512]{0}', space=vmem, size = 0x400, scoped, tag = 'input window, operand 11, single buffered']
    #allocation21 [shape = 's32[1]{0}', space=sflag, size = 0x4, scoped, tag = 'scoped memory for tpu_custom_call.1']
    #allocation22 [shape = 'u8[8192]{0}', space=vmem, size = 0x2000, scoped, tag = 'output window, operand 0']
    %17 = vsyncpa [#allocation3], 0
    %s18 = scalar_lea.sflag [#allocation3], 1
    %19 = vsyncpa %s18, 0
    %20 = vsyncpa [#allocation6], 0
    %21 = vsyncpa [#allocation9], 0
    %22 = vsyncpa [#allocation12], 0
    %23 = vsyncpa [#allocation15], 0
    %24 = vsyncpa [#allocation18], 0
    %25 = vsyncpa [#allocation21], 0
    %26 = vsyncpa [#allocation4], 0
    %s27 = scalar_lea.sflag [#allocation4], 1
    %28 = vsyncpa %s27, 0
    loop: start=0, step=1, limit=4
    $region2: #{tpu_custom_call.1} parent=1 // loop_pre_header
      _
    $region3: #{tpu_custom_call.1} parent=1 // loop_header
      %s30 = sphi 0, %s34
      %p31 = scmp.ge.s32.totalorder %s30, 4
      %s40 = sphi 0, %s42
      %s43 = sphi 0, %s40
      %s44 = sphi 0, %s43
      %s60 = sphi 0, %s44
      %s64 = sphi 0, %s64
      %s66 = sphi 0, %s64
      %s67 = sphi 0, %s66
      %s81 = sphi 0, %s67
      %s85 = sphi 0, %s85
      %s87 = sphi 0, %s85
      %s88 = sphi 0, %s87
      %s102 = sphi 0, %s88
      %s106 = sphi 0, %s106
      %s108 = sphi 0, %s106
      %s109 = sphi 0, %s108
      %s123 = sphi 0, %s109
      %s127 = sphi 0, %s127
      %s129 = sphi 0, %s127
      %s130 = sphi 0, %s129
      %s144 = sphi 0, %s130
      %s148 = sphi 0, %s148
      %s150 = sphi 0, %s148
      %s151 = sphi 0, %s150
      %s165 = sphi 0, %s151
      %s169 = sphi 0, %s169
      %s171 = sphi 0, %s169
      %s172 = sphi 0, %s171
      %s186 = sphi 0, %s172
      %s190 = sphi 0, %s190
      %s192 = sphi 0, %s190
      %s193 = sphi 0, %s192
      %s207 = sphi 0, %s193
      %s211 = sphi 0, %s211
      %s213 = sphi 0, %s211
      %s214 = sphi 0, %s213
      %s228 = sphi 0, %s214
      %s232 = sphi 0, %s232
      %s234 = sphi 0, %s232
      %s235 = sphi 0, %s234
      %s249 = sphi 0, %s235
      %s253 = sphi 0, %s253
      %s255 = sphi 0, %s253
      %s256 = sphi 0, %s255
      %s270 = sphi 0, %s256
      %s274 = sphi 0, %s274
      %s276 = sphi 0, %s274
      %s277 = sphi 0, %s276
      %s291 = sphi 0, %s277
      %s297 = sphi 0, %s299
      %s300 = sphi 0, %s297
      %s301 = sphi 0, %s300
      %s317 = sphi 0, %s301
    $region4: #{tpu_custom_call.1} parent=1 // loop_header_branch
      %33 = sbr.rel (%p31) target = $region8
    $region5: #{tpu_custom_call.1} parent=1 // loop_body
      %s35 = ssub.s32 %s30, 1
      %s36 = ssub.s32 %s30, 2
      %s37 = sadd.s32 %s30, 1
      %s38 = ssub.s32 %s30, %s37
      %p39 = scmp.eq.s32.totalorder %s38, 0
      %s41 = sadd.s32 %s40, 1
      %s42 = scalar_select %p39, %s40, %s41
      %p45 = pneg %p39
      %p46 = scmp.eq.s32.totalorder %s30, 1
      %p47 = por %p45, %p46
      %p48 = scmp.ne.s32.totalorder %s40, %s43
      %p49 = scmp.eq.s32.totalorder %s30, 0
      %p50 = por %p48, %p49
      %p51 = scmp.ne.s32.totalorder %s40, %s43
      %p52 = scmp.eq.s32.totalorder %s35, 1
      %p53 = por %p51, %p52
      %p54 = scmp.ne.s32.totalorder %s43, %s44
      %p55 = scmp.eq.s32.totalorder %s35, 0
      %p56 = por %p54, %p55
      %p57 = scmp.ne.s32.totalorder %s43, %s44
      %p58 = scmp.eq.s32.totalorder %s36, 1
      %p59 = por %p57, %p58
      %p61 = scmp.ne.s32.totalorder %s44, %s60
      %p62 = scmp.eq.s32.totalorder %s36, 0
      %p63 = por %p61, %p62
      %s65 = sadd.s32 %s64, 1
      %p68 = scmp.eq.s32.totalorder %s30, 1
      %p69 = scmp.ne.s32.totalorder %s64, %s66
      %p70 = scmp.eq.s32.totalorder %s30, 0
      %p71 = por %p69, %p70
      %p72 = scmp.ne.s32.totalorder %s64, %s66
      %p73 = scmp.eq.s32.totalorder %s35, 1
      %p74 = por %p72, %p73
      %p75 = scmp.ne.s32.totalorder %s66, %s67
      %p76 = scmp.eq.s32.totalorder %s35, 0
      %p77 = por %p75, %p76
      %p78 = scmp.ne.s32.totalorder %s66, %s67
      %p79 = scmp.eq.s32.totalorder %s36, 1
      %p80 = por %p78, %p79
      %p82 = scmp.ne.s32.totalorder %s67, %s81
      %p83 = scmp.eq.s32.totalorder %s36, 0
      %p84 = por %p82, %p83
      %s86 = sadd.s32 %s85, 1
      %p89 = scmp.eq.s32.totalorder %s30, 1
      %p90 = scmp.ne.s32.totalorder %s85, %s87
      %p91 = scmp.eq.s32.totalorder %s30, 0
      %p92 = por %p90, %p91
      %p93 = scmp.ne.s32.totalorder %s85, %s87
      %p94 = scmp.eq.s32.totalorder %s35, 1
      %p95 = por %p93, %p94
      %p96 = scmp.ne.s32.totalorder %s87, %s88
      %p97 = scmp.eq.s32.totalorder %s35, 0
      %p98 = por %p96, %p97
      %p99 = scmp.ne.s32.totalorder %s87, %s88
      %p100 = scmp.eq.s32.totalorder %s36, 1
      %p101 = por %p99, %p100
      %p103 = scmp.ne.s32.totalorder %s88, %s102
      %p104 = scmp.eq.s32.totalorder %s36, 0
      %p105 = por %p103, %p104
      %s107 = sadd.s32 %s106, 1
      %p110 = scmp.eq.s32.totalorder %s30, 1
      %p111 = scmp.ne.s32.totalorder %s106, %s108
      %p112 = scmp.eq.s32.totalorder %s30, 0
      %p113 = por %p111, %p112
      %p114 = scmp.ne.s32.totalorder %s106, %s108
      %p115 = scmp.eq.s32.totalorder %s35, 1
      %p116 = por %p114, %p115
      %p117 = scmp.ne.s32.totalorder %s108, %s109
      %p118 = scmp.eq.s32.totalorder %s35, 0
      %p119 = por %p117, %p118
      %p120 = scmp.ne.s32.totalorder %s108, %s109
      %p121 = scmp.eq.s32.totalorder %s36, 1
      %p122 = por %p120, %p121
      %p124 = scmp.ne.s32.totalorder %s109, %s123
      %p125 = scmp.eq.s32.totalorder %s36, 0
      %p126 = por %p124, %p125
      %s128 = sadd.s32 %s127, 1
      %p131 = scmp.eq.s32.totalorder %s30, 1
      %p132 = scmp.ne.s32.totalorder %s127, %s129
      %p133 = scmp.eq.s32.totalorder %s30, 0
      %p134 = por %p132, %p133
      %p135 = scmp.ne.s32.totalorder %s127, %s129
      %p136 = scmp.eq.s32.totalorder %s35, 1
      %p137 = por %p135, %p136
      %p138 = scmp.ne.s32.totalorder %s129, %s130
      %p139 = scmp.eq.s32.totalorder %s35, 0
      %p140 = por %p138, %p139
      %p141 = scmp.ne.s32.totalorder %s129, %s130
      %p142 = scmp.eq.s32.totalorder %s36, 1
      %p143 = por %p141, %p142
      %p145 = scmp.ne.s32.totalorder %s130, %s144
      %p146 = scmp.eq.s32.totalorder %s36, 0
      %p147 = por %p145, %p146
      %s149 = sadd.s32 %s148, 1
      %p152 = scmp.eq.s32.totalorder %s30, 1
      %p153 = scmp.ne.s32.totalorder %s148, %s150
      %p154 = scmp.eq.s32.totalorder %s30, 0
      %p155 = por %p153, %p154
      %p156 = scmp.ne.s32.totalorder %s148, %s150
      %p157 = scmp.eq.s32.totalorder %s35, 1
      %p158 = por %p156, %p157
      %p159 = scmp.ne.s32.totalorder %s150, %s151
      %p160 = scmp.eq.s32.totalorder %s35, 0
      %p161 = por %p159, %p160
      %p162 = scmp.ne.s32.totalorder %s150, %s151
      %p163 = scmp.eq.s32.totalorder %s36, 1
      %p164 = por %p162, %p163
      %p166 = scmp.ne.s32.totalorder %s151, %s165
      %p167 = scmp.eq.s32.totalorder %s36, 0
      %p168 = por %p166, %p167
      %s170 = sadd.s32 %s169, 1
      %p173 = scmp.eq.s32.totalorder %s30, 1
      %p174 = scmp.ne.s32.totalorder %s169, %s171
      %p175 = scmp.eq.s32.totalorder %s30, 0
      %p176 = por %p174, %p175
      %p177 = scmp.ne.s32.totalorder %s169, %s171
      %p178 = scmp.eq.s32.totalorder %s35, 1
      %p179 = por %p177, %p178
      %p180 = scmp.ne.s32.totalorder %s171, %s172
      %p181 = scmp.eq.s32.totalorder %s35, 0
      %p182 = por %p180, %p181
      %p183 = scmp.ne.s32.totalorder %s171, %s172
      %p184 = scmp.eq.s32.totalorder %s36, 1
      %p185 = por %p183, %p184
      %p187 = scmp.ne.s32.totalorder %s172, %s186
      %p188 = scmp.eq.s32.totalorder %s36, 0
      %p189 = por %p187, %p188
      %s191 = sadd.s32 %s190, 1
      %p194 = scmp.eq.s32.totalorder %s30, 1
      %p195 = scmp.ne.s32.totalorder %s190, %s192
      %p196 = scmp.eq.s32.totalorder %s30, 0
      %p197 = por %p195, %p196
      %p198 = scmp.ne.s32.totalorder %s190, %s192
      %p199 = scmp.eq.s32.totalorder %s35, 1
      %p200 = por %p198, %p199
      %p201 = scmp.ne.s32.totalorder %s192, %s193
      %p202 = scmp.eq.s32.totalorder %s35, 0
      %p203 = por %p201, %p202
      %p204 = scmp.ne.s32.totalorder %s192, %s193
      %p205 = scmp.eq.s32.totalorder %s36, 1
      %p206 = por %p204, %p205
      %p208 = scmp.ne.s32.totalorder %s193, %s207
      %p209 = scmp.eq.s32.totalorder %s36, 0
      %p210 = por %p208, %p209
      %s212 = sadd.s32 %s211, 1
      %p215 = scmp.eq.s32.totalorder %s30, 1
      %p216 = scmp.ne.s32.totalorder %s211, %s213
      %p217 = scmp.eq.s32.totalorder %s30, 0
      %p218 = por %p216, %p217
      %p219 = scmp.ne.s32.totalorder %s211, %s213
      %p220 = scmp.eq.s32.totalorder %s35, 1
      %p221 = por %p219, %p220
      %p222 = scmp.ne.s32.totalorder %s213, %s214
      %p223 = scmp.eq.s32.totalorder %s35, 0
      %p224 = por %p222, %p223
      %p225 = scmp.ne.s32.totalorder %s213, %s214
      %p226 = scmp.eq.s32.totalorder %s36, 1
      %p227 = por %p225, %p226
      %p229 = scmp.ne.s32.totalorder %s214, %s228
      %p230 = scmp.eq.s32.totalorder %s36, 0
      %p231 = por %p229, %p230
      %s233 = sadd.s32 %s232, 1
      %p236 = scmp.eq.s32.totalorder %s30, 1
      %p237 = scmp.ne.s32.totalorder %s232, %s234
      %p238 = scmp.eq.s32.totalorder %s30, 0
      %p239 = por %p237, %p238
      %p240 = scmp.ne.s32.totalorder %s232, %s234
      %p241 = scmp.eq.s32.totalorder %s35, 1
      %p242 = por %p240, %p241
      %p243 = scmp.ne.s32.totalorder %s234, %s235
      %p244 = scmp.eq.s32.totalorder %s35, 0
      %p245 = por %p243, %p244
      %p246 = scmp.ne.s32.totalorder %s234, %s235
      %p247 = scmp.eq.s32.totalorder %s36, 1
      %p248 = por %p246, %p247
      %p250 = scmp.ne.s32.totalorder %s235, %s249
      %p251 = scmp.eq.s32.totalorder %s36, 0
      %p252 = por %p250, %p251
      %s254 = sadd.s32 %s253, 1
      %p257 = scmp.eq.s32.totalorder %s30, 1
      %p258 = scmp.ne.s32.totalorder %s253, %s255
      %p259 = scmp.eq.s32.totalorder %s30, 0
      %p260 = por %p258, %p259
      %p261 = scmp.ne.s32.totalorder %s253, %s255
      %p262 = scmp.eq.s32.totalorder %s35, 1
      %p263 = por %p261, %p262
      %p264 = scmp.ne.s32.totalorder %s255, %s256
      %p265 = scmp.eq.s32.totalorder %s35, 0
      %p266 = por %p264, %p265
      %p267 = scmp.ne.s32.totalorder %s255, %s256
      %p268 = scmp.eq.s32.totalorder %s36, 1
      %p269 = por %p267, %p268
      %p271 = scmp.ne.s32.totalorder %s256, %s270
      %p272 = scmp.eq.s32.totalorder %s36, 0
      %p273 = por %p271, %p272
      %s275 = sadd.s32 %s274, 1
      %p278 = scmp.eq.s32.totalorder %s30, 1
      %p279 = scmp.ne.s32.totalorder %s274, %s276
      %p280 = scmp.eq.s32.totalorder %s30, 0
      %p281 = por %p279, %p280
      %p282 = scmp.ne.s32.totalorder %s274, %s276
      %p283 = scmp.eq.s32.totalorder %s35, 1
      %p284 = por %p282, %p283
      %p285 = scmp.ne.s32.totalorder %s276, %s277
      %p286 = scmp.eq.s32.totalorder %s35, 0
      %p287 = por %p285, %p286
      %p288 = scmp.ne.s32.totalorder %s276, %s277
      %p289 = scmp.eq.s32.totalorder %s36, 1
      %p290 = por %p288, %p289
      %p292 = scmp.ne.s32.totalorder %s277, %s291
      %p293 = scmp.eq.s32.totalorder %s36, 0
      %p294 = por %p292, %p293
      %s295 = ssub.s32 %s30, %s37
      %p296 = scmp.eq.s32.totalorder %s295, 0
      %s298 = sadd.s32 %s297, 1
      %s299 = scalar_select %p296, %s297, %s298
      %p302 = pneg %p296
      %p303 = scmp.eq.s32.totalorder %s30, 1
      %p304 = por %p302, %p303
      %p305 = scmp.ne.s32.totalorder %s297, %s300
      %p306 = scmp.eq.s32.totalorder %s30, 0
      %p307 = por %p305, %p306
      %p308 = scmp.ne.s32.totalorder %s297, %s300
      %p309 = scmp.eq.s32.totalorder %s35, 1
      %p310 = por %p308, %p309
      %p311 = scmp.ne.s32.totalorder %s300, %s301
      %p312 = scmp.eq.s32.totalorder %s35, 0
      %p313 = por %p311, %p312
      %p314 = scmp.ne.s32.totalorder %s300, %s301
      %p315 = scmp.eq.s32.totalorder %s36, 1
      %p316 = por %p314, %p315
      %p318 = scmp.ne.s32.totalorder %s301, %s317
      %p319 = scmp.eq.s32.totalorder %s36, 0
      %p320 = por %p318, %p319
      %p321 = scmp.le.s32.totalorder 1, %s30
      %p322 = scmp.lt.s32.totalorder %s30, 3
      %p323 = pnand %p321, %p322
      %p324 = pneg %p323
      // Predicated region
      $region9: #{tpu_custom_call.1} parent=5 // pred_check
        _
      $region10: #{tpu_custom_call.1} parent=5 // pred_check_branch
        %326 = sbr.rel (%p323) target = $region12
      $region11: #{tpu_custom_call.1} parent=5 // pred_region
        %s327 = ssub.s32 %s30, 1
        // Predicated region
        $region13: #{tpu_custom_call.1} parent=11 // pred_check
          %p328 = pneg %p77
        $region14: #{tpu_custom_call.1} parent=11 // pred_check_branch
          %330 = sbr.rel (%p328) target = $region16
        $region15: #{tpu_custom_call.1} parent=11 // pred_region
          %s332 = ssub.s32 16, 16
          %333 = vsyncadd [#allocation6], %s332
          %s335 = sshll.u32 [#allocation5], 4
          %s336 = int_to_ptr.vmem [resolvable:$true] %s335
          %338 = dma.hbm_to_vmem [thread:$0]  %s1, 16, %s336, [#allocation6]
        $region16: #{tpu_custom_call.1} parent=11 // pred_fallthru
          _
        // Predicated region
        $region17: #{tpu_custom_call.1} parent=11 // pred_check
          %p339 = pneg %p98
        $region18: #{tpu_custom_call.1} parent=11 // pred_check_branch
          %341 = sbr.rel (%p339) target = $region20
        $region19: #{tpu_custom_call.1} parent=11 // pred_region
          %s343 = ssub.s32 16, 16
          %344 = vsyncadd [#allocation6], %s343
          %s346 = sshll.u32 [#allocation7], 4
          %s347 = int_to_ptr.vmem [resolvable:$true] %s346
          %349 = dma.hbm_to_vmem [thread:$0]  %s2, 16, %s347, [#allocation6]
        $region20: #{tpu_custom_call.1} parent=11 // pred_fallthru
          _
        // Predicated region
        $region21: #{tpu_custom_call.1} parent=11 // pred_check
          %p350 = pneg %p119
        $region22: #{tpu_custom_call.1} parent=11 // pred_check_branch
          %352 = sbr.rel (%p350) target = $region24
        $region23: #{tpu_custom_call.1} parent=11 // pred_region
          %s354 = ssub.s32 128, 128
          %355 = vsyncadd [#allocation9], %s354
          %s357 = sshll.u32 [#allocation8], 4
          %s358 = int_to_ptr.vmem [resolvable:$true] %s357
          %360 = dma.hbm_to_vmem [thread:$0]  %s3, 128, %s358, [#allocation9]
        $region24: #{tpu_custom_call.1} parent=11 // pred_fallthru
          _
        // Predicated region
        $region25: #{tpu_custom_call.1} parent=11 // pred_check
          %p361 = pneg %p140
        $region26: #{tpu_custom_call.1} parent=11 // pred_check_branch
          %363 = sbr.rel (%p361) target = $region28
        $region27: #{tpu_custom_call.1} parent=11 // pred_region
          %s365 = ssub.s32 128, 128
          %366 = vsyncadd [#allocation9], %s365
          %s368 = sshll.u32 [#allocation10], 4
          %s369 = int_to_ptr.vmem [resolvable:$true] %s368
          %371 = dma.hbm_to_vmem [thread:$0]  %s4, 128, %s369, [#allocation9]
        $region28: #{tpu_custom_call.1} parent=11 // pred_fallthru
          _
        // Predicated region
        $region29: #{tpu_custom_call.1} parent=11 // pred_check
          %p372 = pneg %p161
        $region30: #{tpu_custom_call.1} parent=11 // pred_check_branch
          %374 = sbr.rel (%p372) target = $region32
        $region31: #{tpu_custom_call.1} parent=11 // pred_region
          %s376 = ssub.s32 128, 128
          %377 = vsyncadd [#allocation12], %s376
          %s379 = sshll.u32 [#allocation11], 4
          %s380 = int_to_ptr.vmem [resolvable:$true] %s379
          %382 = dma.hbm_to_vmem [thread:$0]  %s5, 128, %s380, [#allocation12]
        $region32: #{tpu_custom_call.1} parent=11 // pred_fallthru
          _
        // Predicated region
        $region33: #{tpu_custom_call.1} parent=11 // pred_check
          %p383 = pneg %p182
        $region34: #{tpu_custom_call.1} parent=11 // pred_check_branch
          %385 = sbr.rel (%p383) target = $region36
        $region35: #{tpu_custom_call.1} parent=11 // pred_region
          %s387 = ssub.s32 4096, 4096
          %388 = vsyncadd [#allocation12], %s387
          %s389 = sshll.u32 [#allocation13], 4
          %s390 = int_to_ptr.vmem [resolvable:$true] %s389
          %395 = dma.hbm_to_vmem [thread:$0]  %s6, 4096, %s390, [#allocation12], 256, 256, 16
        $region36: #{tpu_custom_call.1} parent=11 // pred_fallthru
          _
        // Predicated region
        $region37: #{tpu_custom_call.1} parent=11 // pred_check
          %p396 = pneg %p203
        $region38: #{tpu_custom_call.1} parent=11 // pred_check_branch
          %398 = sbr.rel (%p396) target = $region40
        $region39: #{tpu_custom_call.1} parent=11 // pred_region
          %s400 = ssub.s32 32, 32
          %401 = vsyncadd [#allocation15], %s400
          %s403 = sshll.u32 [#allocation14], 4
          %s404 = int_to_ptr.vmem [resolvable:$true] %s403
          %406 = dma.hbm_to_vmem [thread:$0]  %s7, 32, %s404, [#allocation15]
        $region40: #{tpu_custom_call.1} parent=11 // pred_fallthru
          _
        // Predicated region
        $region41: #{tpu_custom_call.1} parent=11 // pred_check
          %p407 = pneg %p224
        $region42: #{tpu_custom_call.1} parent=11 // pred_check_branch
          %409 = sbr.rel (%p407) target = $region44
        $region43: #{tpu_custom_call.1} parent=11 // pred_region
          %s411 = ssub.s32 2048, 2048
          %412 = vsyncadd [#allocation15], %s411
          %s413 = sshll.u32 [#allocation16], 4
          %s414 = int_to_ptr.vmem [resolvable:$true] %s413
          %419 = dma.hbm_to_vmem [thread:$0]  %s8, 2048, %s414, [#allocation15], 128, 128, 8
        $region44: #{tpu_custom_call.1} parent=11 // pred_fallthru
          _
        // Predicated region
        $region45: #{tpu_custom_call.1} parent=11 // pred_check
          %p420 = pneg %p245
        $region46: #{tpu_custom_call.1} parent=11 // pred_check_branch
          %422 = sbr.rel (%p420) target = $region48
        $region47: #{tpu_custom_call.1} parent=11 // pred_region
          %s424 = ssub.s32 16, 16
          %425 = vsyncadd [#allocation18], %s424
          %s427 = sshll.u32 [#allocation17], 4
          %s428 = int_to_ptr.vmem [resolvable:$true] %s427
          %430 = dma.hbm_to_vmem [thread:$0]  %s9, 16, %s428, [#allocation18]
        $region48: #{tpu_custom_call.1} parent=11 // pred_fallthru
          _
        // Predicated region
        $region49: #{tpu_custom_call.1} parent=11 // pred_check
          %p431 = pneg %p266
        $region50: #{tpu_custom_call.1} parent=11 // pred_check_branch
          %433 = sbr.rel (%p431) target = $region52
        $region51: #{tpu_custom_call.1} parent=11 // pred_region
          %s435 = ssub.s32 2048, 2048
          %436 = vsyncadd [#allocation18], %s435
          %s437 = sshll.u32 [#allocation19], 4
          %s438 = int_to_ptr.vmem [resolvable:$true] %s437
          %443 = dma.hbm_to_vmem [thread:$0]  %s10, 2048, %s438, [#allocation18], 128, 128, 8
        $region52: #{tpu_custom_call.1} parent=11 // pred_fallthru
          _
        // Predicated region
        $region53: #{tpu_custom_call.1} parent=11 // pred_check
          %p444 = pneg %p287
        $region54: #{tpu_custom_call.1} parent=11 // pred_check_branch
          %446 = sbr.rel (%p444) target = $region56
        $region55: #{tpu_custom_call.1} parent=11 // pred_region
          %s448 = ssub.s32 16, 16
          %449 = vsyncadd [#allocation21], %s448
          %s451 = sshll.u32 [#allocation20], 4
          %s452 = int_to_ptr.vmem [resolvable:$true] %s451
          %454 = dma.hbm_to_vmem [thread:$0]  %s11, 16, %s452, [#allocation21]
        $region56: #{tpu_custom_call.1} parent=11 // pred_fallthru
          _
      $region12: #{tpu_custom_call.1} parent=5 // pred_fallthru
        _
      %p455 = scmp.lt.s32.totalorder %s30, 2
      // Predicated region
      $region57: #{tpu_custom_call.1} parent=5 // pred_check
        %p456 = pneg %p455
      $region58: #{tpu_custom_call.1} parent=5 // pred_check_branch
        %458 = sbr.rel (%p456) target = $region60
      $region59: #{tpu_custom_call.1} parent=5 // pred_region
        // Predicated region
        $region61: #{tpu_custom_call.1} parent=59 // pred_check
          %p459 = pneg %p50
        $region62: #{tpu_custom_call.1} parent=59 // pred_check_branch
          %461 = sbr.rel (%p459) target = $region64
        $region63: #{tpu_custom_call.1} parent=59 // pred_region
          %s462 = sand.u32 %s40, 1
          %s463 = scalar_lea.sflag [#allocation3], %s462
          %s464 = sand.u32 %s40, 1
          %s465 = smul.addr %s464, 8
          %s466 = scalar_lea.vmem [#allocation2], %s465
          %s468 = ssub.s32 128, 128
          %469 = vsyncadd %s463, %s468
          %s470 = smul.addr %s30, 128
          %s471 = scalar_lea.hbm %s0, %s470
          %s473 = sshll.u32 %s466, 4
          %s474 = int_to_ptr.vmem [resolvable:$true] %s473
          %476 = dma.hbm_to_vmem [thread:$0]  %s471, 128, %s474, %s463
        $region64: #{tpu_custom_call.1} parent=59 // pred_fallthru
          _
      $region60: #{tpu_custom_call.1} parent=5 // pred_fallthru
        _
      %p477 = scmp.le.s32.totalorder 1, %s30
      %p478 = scmp.lt.s32.totalorder %s30, 3
      %p479 = pnand %p477, %p478
      %p480 = pneg %p479
      // Predicated region
      $region65: #{tpu_custom_call.1} parent=5 // pred_check
        _
      $region66: #{tpu_custom_call.1} parent=5 // pred_check_branch
        %482 = sbr.rel (%p479) target = $region68
      $region67: #{tpu_custom_call.1} parent=5 // pred_region
        %s483 = ssub.s32 %s30, 1
        %s484 = sand.u32 %s43, 1
        %s485 = scalar_lea.sflag [#allocation3], %s484
        %s486 = sand.u32 %s43, 1
        %s487 = smul.addr %s486, 8
        %s488 = scalar_lea.vmem [#allocation2], %s487
        // Predicated region
        $region69: #{tpu_custom_call.1} parent=67 // pred_check
          %p489 = pneg %p56
        $region70: #{tpu_custom_call.1} parent=67 // pred_check_branch
          %491 = sbr.rel (%p489) target = $region72
        $region71: #{tpu_custom_call.1} parent=67 // pred_region
          %492 = dma.done %s485, 128
        $region72: #{tpu_custom_call.1} parent=67 // pred_fallthru
          _
        // Predicated region
        $region73: #{tpu_custom_call.1} parent=67 // pred_check
          %p493 = pneg %p77
        $region74: #{tpu_custom_call.1} parent=67 // pred_check_branch
          %495 = sbr.rel (%p493) target = $region76
        $region75: #{tpu_custom_call.1} parent=67 // pred_region
          %496 = dma.done [#allocation6], 16
        $region76: #{tpu_custom_call.1} parent=67 // pred_fallthru
          _
        // Predicated region
        $region77: #{tpu_custom_call.1} parent=67 // pred_check
          %p497 = pneg %p98
        $region78: #{tpu_custom_call.1} parent=67 // pred_check_branch
          %499 = sbr.rel (%p497) target = $region80
        $region79: #{tpu_custom_call.1} parent=67 // pred_region
          %500 = dma.done [#allocation6], 16
        $region80: #{tpu_custom_call.1} parent=67 // pred_fallthru
          _
        // Predicated region
        $region81: #{tpu_custom_call.1} parent=67 // pred_check
          %p501 = pneg %p119
        $region82: #{tpu_custom_call.1} parent=67 // pred_check_branch
          %503 = sbr.rel (%p501) target = $region84
        $region83: #{tpu_custom_call.1} parent=67 // pred_region
          %504 = dma.done [#allocation9], 128
        $region84: #{tpu_custom_call.1} parent=67 // pred_fallthru
          _
        // Predicated region
        $region85: #{tpu_custom_call.1} parent=67 // pred_check
          %p505 = pneg %p140
        $region86: #{tpu_custom_call.1} parent=67 // pred_check_branch
          %507 = sbr.rel (%p505) target = $region88
        $region87: #{tpu_custom_call.1} parent=67 // pred_region
          %508 = dma.done [#allocation9], 128
        $region88: #{tpu_custom_call.1} parent=67 // pred_fallthru
          _
        // Predicated region
        $region89: #{tpu_custom_call.1} parent=67 // pred_check
          %p509 = pneg %p161
        $region90: #{tpu_custom_call.1} parent=67 // pred_check_branch
          %511 = sbr.rel (%p509) target = $region92
        $region91: #{tpu_custom_call.1} parent=67 // pred_region
          %512 = dma.done [#allocation12], 128
        $region92: #{tpu_custom_call.1} parent=67 // pred_fallthru
          _
        // Predicated region
        $region93: #{tpu_custom_call.1} parent=67 // pred_check
          %p513 = pneg %p182
        $region94: #{tpu_custom_call.1} parent=67 // pred_check_branch
          %515 = sbr.rel (%p513) target = $region96
        $region95: #{tpu_custom_call.1} parent=67 // pred_region
          %516 = dma.done [#allocation12], 4096
        $region96: #{tpu_custom_call.1} parent=67 // pred_fallthru
          _
        // Predicated region
        $region97: #{tpu_custom_call.1} parent=67 // pred_check
          %p517 = pneg %p203
        $region98: #{tpu_custom_call.1} parent=67 // pred_check_branch
          %519 = sbr.rel (%p517) target = $region100
        $region99: #{tpu_custom_call.1} parent=67 // pred_region
          %520 = dma.done [#allocation15], 32
        $region100: #{tpu_custom_call.1} parent=67 // pred_fallthru
          _
        // Predicated region
        $region101: #{tpu_custom_call.1} parent=67 // pred_check
          %p521 = pneg %p224
        $region102: #{tpu_custom_call.1} parent=67 // pred_check_branch
          %523 = sbr.rel (%p521) target = $region104
        $region103: #{tpu_custom_call.1} parent=67 // pred_region
          %524 = dma.done [#allocation15], 2048
        $region104: #{tpu_custom_call.1} parent=67 // pred_fallthru
          _
        // Predicated region
        $region105: #{tpu_custom_call.1} parent=67 // pred_check
          %p525 = pneg %p245
        $region106: #{tpu_custom_call.1} parent=67 // pred_check_branch
          %527 = sbr.rel (%p525) target = $region108
        $region107: #{tpu_custom_call.1} parent=67 // pred_region
          %528 = dma.done [#allocation18], 16
        $region108: #{tpu_custom_call.1} parent=67 // pred_fallthru
          _
        // Predicated region
        $region109: #{tpu_custom_call.1} parent=67 // pred_check
          %p529 = pneg %p266
        $region110: #{tpu_custom_call.1} parent=67 // pred_check_branch
          %531 = sbr.rel (%p529) target = $region112
        $region111: #{tpu_custom_call.1} parent=67 // pred_region
          %532 = dma.done [#allocation18], 2048
        $region112: #{tpu_custom_call.1} parent=67 // pred_fallthru
          _
        // Predicated region
        $region113: #{tpu_custom_call.1} parent=67 // pred_check
          %p533 = pneg %p287
        $region114: #{tpu_custom_call.1} parent=67 // pred_check_branch
          %535 = sbr.rel (%p533) target = $region116
        $region115: #{tpu_custom_call.1} parent=67 // pred_region
          %536 = dma.done [#allocation21], 16
        $region116: #{tpu_custom_call.1} parent=67 // pred_fallthru
          _
        %s537 = sand.u32 %s43, 1
        %s538 = scalar_lea.sflag [#allocation3], %s537
        %s539 = sand.u32 %s43, 1
        %s540 = smul.addr %s539, 8
        %s541 = scalar_lea.vmem [#allocation2], %s540
        %p542 = pneg %p56
        %p543 = pneg %p53
        %p544 = pneg %p77
        %p545 = pneg %p74
        %p546 = pneg %p98
        %p547 = pneg %p95
        %p548 = pneg %p119
        %p549 = pneg %p116
        %p550 = pneg %p140
        %p551 = pneg %p137
        %p552 = pneg %p161
        %p553 = pneg %p158
        %p554 = pneg %p182
        %p555 = pneg %p179
        %p556 = pneg %p203
        %p557 = pneg %p200
        %p558 = pneg %p224
        %p559 = pneg %p221
        %p560 = pneg %p245
        %p561 = pneg %p242
        %p562 = pneg %p266
        %p563 = pneg %p263
        %p564 = pneg %p287
        %p565 = pneg %p284
        %p566 = pneg %p313
        %p567 = pneg %p310
        %s568 = sand.u32 %s300, 1
        %s569 = scalar_lea.sflag [#allocation4], %s568
        %s570 = sand.u32 %s300, 1
        %s571 = smul.addr %s570, 8
        %s572 = scalar_lea.vmem [#allocation22], %s571
        %v573 = vld [vmem:[%s488] sm:$0xff]
        %574 = vadd.xlane.f32.xlu0 %v573
        %v575 = vpop.xlane.xlu0 %574
        %v576 = vrcp.pop 128.0
        %v577 = vmul.f32 %v575, %v576
        %v578 = vsub.f32 %v573, %v577
        %v579 = vmul.f32 %v578, %v578
        %580 = vadd.xlane.f32.xlu0 %v579
        %v581 = vpop.xlane.xlu0 %580
        %v582 = vmul.f32 %v581, %v576
        %v583 = vadd.f32 %v582, 1e-05
        %v584 = vrsqrt.pop %v583
        %v585 = vmul.f32 %v578, %v584
        %v586 = vld [vmem:[#allocation5] sm:$0x1]
        %v588 = vlaneseq
        %v589 = vshrl.u32 %v588, 7
        %v590 = vsub.s32 0, %v589
        %v591 = vrot.slane %v586, %v590
        %v593 = vmul.f32 %v585, %v591
        %v594 = vld [vmem:[#allocation7] sm:$0x1]
        %v596 = vlaneseq
        %v597 = vshrl.u32 %v596, 7
        %v598 = vsub.s32 0, %v597
        %v599 = vrot.slane %v594, %v598
        %v601 = vadd.f32 %v593, %v599
        %602 = vrot.lane.b32.xlu0 %v601, 1
        %v603 = vpop.permute.xlu0 %602
        %604 = vrot.lane.b32.xlu0 %v601, 127
        %v605 = vpop.permute.xlu0 %604
        %v606 = vld [vmem:[#allocation8] sm:$0xff]
        %v607 = vmul.f32 %v601, %v606
        %v608 = vld [vmem:[#allocation10] sm:$0xff]
        %v609 = vmul.f32 %v603, %v608
        %v610 = vadd.f32 %v607, %v609
        %v611 = vld [vmem:[#allocation11] sm:$0xff]
        %v612 = vmul.f32 %v605, %v611
        %v613 = vadd.f32 %v610, %v612
        %v614 = vld [vmem:[#allocation13] sm:$0xff]
        %v615 = vld [vmem:[#allocation13 + $0x8] sm:$0xff]
        %v616 = vld [vmem:[#allocation13 + $0x10] sm:$0xff]
        %v617 = vld [vmem:[#allocation13 + $0x18] sm:$0xff]
        %v618 = vld [vmem:[#allocation13 + $0x20] sm:$0xff]
        %v619 = vld [vmem:[#allocation13 + $0x28] sm:$0xff]
        %v620 = vld [vmem:[#allocation13 + $0x30] sm:$0xff]
        %v621 = vld [vmem:[#allocation13 + $0x38] sm:$0xff]
        %v622 = vld [vmem:[#allocation13 + $0x40] sm:$0xff]
        %v623 = vld [vmem:[#allocation13 + $0x48] sm:$0xff]
        %v624 = vld [vmem:[#allocation13 + $0x50] sm:$0xff]
        %v625 = vld [vmem:[#allocation13 + $0x58] sm:$0xff]
        %v626 = vld [vmem:[#allocation13 + $0x60] sm:$0xff]
        %v627 = vld [vmem:[#allocation13 + $0x68] sm:$0xff]
        %v628 = vld [vmem:[#allocation13 + $0x70] sm:$0xff]
        %v629 = vld [vmem:[#allocation13 + $0x78] sm:$0xff]
        %v630 = vld [vmem:[#allocation13 + $0x80] sm:$0xff]
        %v631 = vld [vmem:[#allocation13 + $0x88] sm:$0xff]
        %v632 = vld [vmem:[#allocation13 + $0x90] sm:$0xff]
        %v633 = vld [vmem:[#allocation13 + $0x98] sm:$0xff]
        %v634 = vld [vmem:[#allocation13 + $0xa0] sm:$0xff]
        %v635 = vld [vmem:[#allocation13 + $0xa8] sm:$0xff]
        %v636 = vld [vmem:[#allocation13 + $0xb0] sm:$0xff]
        %v637 = vld [vmem:[#allocation13 + $0xb8] sm:$0xff]
        %v638 = vld [vmem:[#allocation13 + $0xc0] sm:$0xff]
        %v639 = vld [vmem:[#allocation13 + $0xc8] sm:$0xff]
        %v640 = vld [vmem:[#allocation13 + $0xd0] sm:$0xff]
        %v641 = vld [vmem:[#allocation13 + $0xd8] sm:$0xff]
        %v642 = vld [vmem:[#allocation13 + $0xe0] sm:$0xff]
        %v643 = vld [vmem:[#allocation13 + $0xe8] sm:$0xff]
        %v644 = vld [vmem:[#allocation13 + $0xf0] sm:$0xff]
        %v645 = vld [vmem:[#allocation13 + $0xf8] sm:$0xff]
        %v646 = vld [vmem:[#allocation14] sm:$0x3]
        %v648 = vlaneseq
        %v649 = vshrl.u32 %v648, 7
        %v650 = vsub.s32 0, %v649
        %v651 = vrot.slane %v646, %v650
        %v652 = vlaneseq
        %v653 = vshrl.u32 %v652, 7
        %v654 = vsub.s32 1, %v653
        %v655 = vrot.slane %v646, %v654
        %658 = vmatprep.subr.mxu0 %v615
        %659 = vmatpush1.msra.mxu0 %v614
        %660 = vmatprep.subr.mxu0 %v617
        %661 = vmatpush1.msra.mxu0 %v616
        %662 = vmatprep.subr.mxu0 %v619
        %663 = vmatpush1.msra.mxu0 %v618
        %664 = vmatprep.subr.mxu0 %v621
        %665 = vmatpush1.msra.mxu0 %v620
        %666 = vmatprep.subr.mxu0 %v623
        %667 = vmatpush1.msra.mxu0 %v622
        %668 = vmatprep.subr.mxu0 %v625
        %669 = vmatpush1.msra.mxu0 %v624
        %670 = vmatprep.subr.mxu0 %v627
        %671 = vmatpush1.msra.mxu0 %v626
        %672 = vmatprep.subr.mxu0 %v629
        %673 = vmatpush1.msra.mxu0 %v628
        %674 = vmatprep.subr.mxu0 %v631
        %675 = vmatpush1.msra.mxu0 %v630
        %676 = vmatprep.subr.mxu0 %v633
        %677 = vmatpush1.msra.mxu0 %v632
        %678 = vmatprep.subr.mxu0 %v635
        %679 = vmatpush1.msra.mxu0 %v634
        %680 = vmatprep.subr.mxu0 %v637
        %681 = vmatpush1.msra.mxu0 %v636
        %682 = vmatprep.subr.mxu0 %v639
        %683 = vmatpush1.msra.mxu0 %v638
        %684 = vmatprep.subr.mxu0 %v641
        %685 = vmatpush1.msra.mxu0 %v640
        %686 = vmatprep.subr.mxu0 %v643
        %687 = vmatpush1.msra.mxu0 %v642
        %688 = vmatprep.subr.mxu0 %v645
        %689 = vmatpush1.msra.mxu0 %v644
        %690 = vmatprep.subr.mxu0 0.0
        %691 = vmatpush1.msra.mxu0 0.0
        %692 = vmatprep.subr.mxu0 0.0
        %693 = vmatpush1.msra.mxu0 0.0
        %694 = vmatprep.subr.mxu0 0.0
        %695 = vmatpush1.msra.mxu0 0.0
        %696 = vmatprep.subr.mxu0 0.0
        %697 = vmatpush1.msra.mxu0 0.0
        %698 = vmatprep.subr.mxu0 0.0
        %699 = vmatpush1.msra.mxu0 0.0
        %700 = vmatprep.subr.mxu0 0.0
        %701 = vmatpush1.msra.mxu0 0.0
        %702 = vmatprep.subr.mxu0 0.0
        %703 = vmatpush1.msra.mxu0 0.0
        %704 = vmatprep.subr.mxu0 0.0
        %705 = vmatpush1.msra.mxu0 0.0
        %706 = vmatprep.subr.mxu0 0.0
        %707 = vmatpush1.msra.mxu0 0.0
        %708 = vmatprep.subr.mxu0 0.0
        %709 = vmatpush1.msra.mxu0 0.0
        %710 = vmatprep.subr.mxu0 0.0
        %711 = vmatpush1.msra.mxu0 0.0
        %712 = vmatprep.subr.mxu0 0.0
        %713 = vmatpush1.msra.mxu0 0.0
        %714 = vmatprep.subr.mxu0 0.0
        %715 = vmatpush1.msra.mxu0 0.0
        %716 = vmatprep.subr.mxu0 0.0
        %717 = vmatpush1.msra.mxu0 0.0
        %718 = vmatprep.subr.mxu0 0.0
        %719 = vmatpush1.msra.mxu0 0.0
        %720 = vmatprep.subr.mxu0 0.0
        %721 = vmatpush1.msra.mxu0 0.0
        %722 = vmatprep.mubr.f32.mxu0 0.0
        %723 = vmatmul.mubr.f32.gmra.mrb[0].mxu0 %v613
        %v724 = vpop.f32.mrb[0].mxu0
        %v725 = vadd.f32 %v651, %v724
        %v726 = vpop.f32.mrb[0].mxu0
        %v727 = vadd.f32 %v655, %v726
        %728 = vdwg.mxu0
        %v729 = vld [vmem:[#allocation16] sm:$0xff]
        %v730 = vld [vmem:[#allocation16 + $0x8] sm:$0xff]
        %v731 = vld [vmem:[#allocation16 + $0x10] sm:$0xff]
        %v732 = vld [vmem:[#allocation16 + $0x18] sm:$0xff]
        %v733 = vld [vmem:[#allocation16 + $0x20] sm:$0xff]
        %v734 = vld [vmem:[#allocation16 + $0x28] sm:$0xff]
        %v735 = vld [vmem:[#allocation16 + $0x30] sm:$0xff]
        %v736 = vld [vmem:[#allocation16 + $0x38] sm:$0xff]
        %v737 = vld [vmem:[#allocation16 + $0x40] sm:$0xff]
        %v738 = vld [vmem:[#allocation16 + $0x48] sm:$0xff]
        %v739 = vld [vmem:[#allocation16 + $0x50] sm:$0xff]
        %v740 = vld [vmem:[#allocation16 + $0x58] sm:$0xff]
        %v741 = vld [vmem:[#allocation16 + $0x60] sm:$0xff]
        %v742 = vld [vmem:[#allocation16 + $0x68] sm:$0xff]
        %v743 = vld [vmem:[#allocation16 + $0x70] sm:$0xff]
        %v744 = vld [vmem:[#allocation16 + $0x78] sm:$0xff]
        %v745 = vld [vmem:[#allocation17] sm:$0x1]
        %v747 = vlaneseq
        %v748 = vshrl.u32 %v747, 7
        %v749 = vsub.s32 0, %v748
        %v750 = vrot.slane %v745, %v749
        %752 = vmatprep.subr.mxu0 0.0
        %753 = vmatpush1.msra.mxu0 %v729
        %754 = vmatprep.subr.mxu0 0.0
        %755 = vmatpush1.msra.mxu0 %v730
        %756 = vmatprep.subr.mxu0 0.0
        %757 = vmatpush1.msra.mxu0 %v731
        %758 = vmatprep.subr.mxu0 0.0
        %759 = vmatpush1.msra.mxu0 %v732
        %760 = vmatprep.subr.mxu0 0.0
        %761 = vmatpush1.msra.mxu0 %v733
        %762 = vmatprep.subr.mxu0 0.0
        %763 = vmatpush1.msra.mxu0 %v734
        %764 = vmatprep.subr.mxu0 0.0
        %765 = vmatpush1.msra.mxu0 %v735
        %766 = vmatprep.subr.mxu0 0.0
        %767 = vmatpush1.msra.mxu0 %v736
        %768 = vmatprep.subr.mxu0 0.0
        %769 = vmatpush1.msra.mxu0 %v737
        %770 = vmatprep.subr.mxu0 0.0
        %771 = vmatpush1.msra.mxu0 %v738
        %772 = vmatprep.subr.mxu0 0.0
        %773 = vmatpush1.msra.mxu0 %v739
        %774 = vmatprep.subr.mxu0 0.0
        %775 = vmatpush1.msra.mxu0 %v740
        %776 = vmatprep.subr.mxu0 0.0
        %777 = vmatpush1.msra.mxu0 %v741
        %778 = vmatprep.subr.mxu0 0.0
        %779 = vmatpush1.msra.mxu0 %v742
        %780 = vmatprep.subr.mxu0 0.0
        %781 = vmatpush1.msra.mxu0 %v743
        %782 = vmatprep.subr.mxu0 0.0
        %783 = vmatpush1.msra.mxu0 %v744
        %784 = vmatprep.subr.mxu0 0.0
        %785 = vmatpush1.msra.mxu0 0.0
        %786 = vmatprep.subr.mxu0 0.0
        %787 = vmatpush1.msra.mxu0 0.0
        %788 = vmatprep.subr.mxu0 0.0
        %789 = vmatpush1.msra.mxu0 0.0
        %790 = vmatprep.subr.mxu0 0.0
        %791 = vmatpush1.msra.mxu0 0.0
        %792 = vmatprep.subr.mxu0 0.0
        %793 = vmatpush1.msra.mxu0 0.0
        %794 = vmatprep.subr.mxu0 0.0
        %795 = vmatpush1.msra.mxu0 0.0
        %796 = vmatprep.subr.mxu0 0.0
        %797 = vmatpush1.msra.mxu0 0.0
        %798 = vmatprep.subr.mxu0 0.0
        %799 = vmatpush1.msra.mxu0 0.0
        %800 = vmatprep.subr.mxu0 0.0
        %801 = vmatpush1.msra.mxu0 0.0
        %802 = vmatprep.subr.mxu0 0.0
        %803 = vmatpush1.msra.mxu0 0.0
        %804 = vmatprep.subr.mxu0 0.0
        %805 = vmatpush1.msra.mxu0 0.0
        %806 = vmatprep.subr.mxu0 0.0
        %807 = vmatpush1.msra.mxu0 0.0
        %808 = vmatprep.subr.mxu0 0.0
        %809 = vmatpush1.msra.mxu0 0.0
        %810 = vmatprep.subr.mxu0 0.0
        %811 = vmatpush1.msra.mxu0 0.0
        %812 = vmatprep.subr.mxu0 0.0
        %813 = vmatpush1.msra.mxu0 0.0
        %814 = vmatprep.subr.mxu0 0.0
        %815 = vmatpush1.msra.mxu0 0.0
        %816 = vmatprep.mubr.f32.mxu0 0.0
        %817 = vmatmul.mubr.f32.gmra.mrb[0].mxu0 %v601
        %v818 = vpop.f32.mrb[0].mxu0
        %v819 = vadd.f32 %v750, %v818
        %v820 = vpop.f32.mrb[0].mxu0
        %821 = vdwg.mxu0
        %823 = vrot.lane.b32.xlu0 %v725, 96
        %v824 = vpop.permute.xlu0 %823
        %825 = vrot.lane.b32.xlu0 %v725, 64
        %v826 = vpop.permute.xlu0 %825
        %827 = vrot.lane.b32.xlu0 %v725, 32
        %v828 = vpop.permute.xlu0 %827
        %830 = vrot.lane.b32.xlu0 %v727, 96
        %v831 = vpop.permute.xlu0 %830
        %832 = vrot.lane.b32.xlu0 %v727, 64
        %v833 = vpop.permute.xlu0 %832
        %834 = vrot.lane.b32.xlu0 %v727, 32
        %v835 = vpop.permute.xlu0 %834
        %837 = vrot.lane.b32.xlu0 %v819, 96
        %v838 = vpop.permute.xlu0 %837
        %840 = vrot.lane.b32.xlu0 %v819, 64
        %v841 = vpop.permute.xlu0 %840
        %843 = vrot.lane.b32.xlu0 %v819, 32
        %v844 = vpop.permute.xlu0 %843
        %v846 = vlaneseq
        %v847 = vshrl.u32 %v846, 7
        %v848 = vlaneseq
        %v849 = vand.u32 %v848, 127
        %vm850 = vcmp.le.s32.totalorder %v849, %v847
        %v851 = vsel %vm850, 0.0, -1e+30
        %vm852 = vcmask 261120
        %v853 = vsel %vm852, %v725, 0
        %v855 = vsel %vm852, %v727, 0
        %857 = vmatprep.subr.mxu0 0.0
        %858 = vmatpush1.xpose.msra.mxu0 %v855
        %859 = vmatprep.subr.mxu0 0.0
        %860 = vmatpush1.xpose.msra.mxu0 0.0
        %861 = vmatprep.subr.mxu0 0.0
        %862 = vmatpush1.xpose.msra.mxu0 0.0
        %863 = vmatprep.subr.mxu0 0.0
        %864 = vmatpush1.xpose.msra.mxu0 0.0
        %865 = vmatprep.subr.mxu0 0.0
        %866 = vmatpush1.xpose.msra.mxu0 0.0
        %867 = vmatprep.subr.mxu0 0.0
        %868 = vmatpush1.xpose.msra.mxu0 0.0
        %869 = vmatprep.subr.mxu0 0.0
        %870 = vmatpush1.xpose.msra.mxu0 0.0
        %871 = vmatprep.subr.mxu0 0.0
        %872 = vmatpush1.xpose.msra.mxu0 0.0
        %873 = vmatprep.subr.mxu0 0.0
        %874 = vmatpush1.xpose.msra.mxu0 0.0
        %875 = vmatprep.subr.mxu0 0.0
        %876 = vmatpush1.xpose.msra.mxu0 0.0
        %877 = vmatprep.subr.mxu0 0.0
        %878 = vmatpush1.xpose.msra.mxu0 0.0
        %879 = vmatprep.subr.mxu0 0.0
        %880 = vmatpush1.xpose.msra.mxu0 0.0
        %881 = vmatprep.subr.mxu0 0.0
        %882 = vmatpush1.xpose.msra.mxu0 0.0
        %883 = vmatprep.subr.mxu0 0.0
        %884 = vmatpush1.xpose.msra.mxu0 0.0
        %885 = vmatprep.subr.mxu0 0.0
        %886 = vmatpush1.xpose.msra.mxu0 0.0
        %887 = vmatprep.subr.mxu0 0.0
        %888 = vmatpush1.xpose.msra.mxu0 0.0
        %889 = vmatprep.subr.mxu0 0.0
        %890 = vmatpush1.xpose.msra.mxu0 0.0
        %891 = vmatprep.subr.mxu0 0.0
        %892 = vmatpush1.xpose.msra.mxu0 0.0
        %893 = vmatprep.subr.mxu0 0.0
        %894 = vmatpush1.xpose.msra.mxu0 0.0
        %895 = vmatprep.subr.mxu0 0.0
        %896 = vmatpush1.xpose.msra.mxu0 0.0
        %897 = vmatprep.subr.mxu0 0.0
        %898 = vmatpush1.xpose.msra.mxu0 0.0
        %899 = vmatprep.subr.mxu0 0.0
        %900 = vmatpush1.xpose.msra.mxu0 0.0
        %901 = vmatprep.subr.mxu0 0.0
        %902 = vmatpush1.xpose.msra.mxu0 0.0
        %903 = vmatprep.subr.mxu0 0.0
        %904 = vmatpush1.xpose.msra.mxu0 0.0
        %905 = vmatprep.subr.mxu0 0.0
        %906 = vmatpush1.xpose.msra.mxu0 0.0
        %907 = vmatprep.subr.mxu0 0.0
        %908 = vmatpush1.xpose.msra.mxu0 0.0
        %909 = vmatprep.subr.mxu0 0.0
        %910 = vmatpush1.xpose.msra.mxu0 0.0
        %911 = vmatprep.subr.mxu0 0.0
        %912 = vmatpush1.xpose.msra.mxu0 0.0
        %913 = vmatprep.subr.mxu0 0.0
        %914 = vmatpush1.xpose.msra.mxu0 0.0
        %915 = vmatprep.subr.mxu0 0.0
        %916 = vmatpush1.xpose.msra.mxu0 0.0
        %917 = vmatprep.subr.mxu0 0.0
        %918 = vmatpush1.xpose.msra.mxu0 0.0
        %919 = vmatprep.subr.mxu0 0.0
        %920 = vmatpush1.xpose.msra.mxu0 0.0
        %921 = vmatprep.mubr.f32.mxu0 0.0
        %922 = vmatmul.mubr.f32.gmra.mrb[0].mxu0 %v853
        %v923 = vpop.f32.mrb[0].mxu0
        %v924 = vadd.f32 %v851, %v923
        %v925 = vpop.f32.mrb[0].mxu0
        %926 = vdwg.mxu0
        %v927 = vsel %vm852, %v824, 0
        %v929 = vsel %vm852, %v831, 0
        %931 = vmatprep.subr.mxu0 0.0
        %932 = vmatpush1.xpose.msra.mxu0 %v929
        %933 = vmatprep.subr.mxu0 0.0
        %934 = vmatpush1.xpose.msra.mxu0 0.0
        %935 = vmatprep.subr.mxu0 0.0
        %936 = vmatpush1.xpose.msra.mxu0 0.0
        %937 = vmatprep.subr.mxu0 0.0
        %938 = vmatpush1.xpose.msra.mxu0 0.0
        %939 = vmatprep.subr.mxu0 0.0
        %940 = vmatpush1.xpose.msra.mxu0 0.0
        %941 = vmatprep.subr.mxu0 0.0
        %942 = vmatpush1.xpose.msra.mxu0 0.0
        %943 = vmatprep.subr.mxu0 0.0
        %944 = vmatpush1.xpose.msra.mxu0 0.0
        %945 = vmatprep.subr.mxu0 0.0
        %946 = vmatpush1.xpose.msra.mxu0 0.0
        %947 = vmatprep.subr.mxu0 0.0
        %948 = vmatpush1.xpose.msra.mxu0 0.0
        %949 = vmatprep.subr.mxu0 0.0
        %950 = vmatpush1.xpose.msra.mxu0 0.0
        %951 = vmatprep.subr.mxu0 0.0
        %952 = vmatpush1.xpose.msra.mxu0 0.0
        %953 = vmatprep.subr.mxu0 0.0
        %954 = vmatpush1.xpose.msra.mxu0 0.0
        %955 = vmatprep.subr.mxu0 0.0
        %956 = vmatpush1.xpose.msra.mxu0 0.0
        %957 = vmatprep.subr.mxu0 0.0
        %958 = vmatpush1.xpose.msra.mxu0 0.0
        %959 = vmatprep.subr.mxu0 0.0
        %960 = vmatpush1.xpose.msra.mxu0 0.0
        %961 = vmatprep.subr.mxu0 0.0
        %962 = vmatpush1.xpose.msra.mxu0 0.0
        %963 = vmatprep.subr.mxu0 0.0
        %964 = vmatpush1.xpose.msra.mxu0 0.0
        %965 = vmatprep.subr.mxu0 0.0
        %966 = vmatpush1.xpose.msra.mxu0 0.0
        %967 = vmatprep.subr.mxu0 0.0
        %968 = vmatpush1.xpose.msra.mxu0 0.0
        %969 = vmatprep.subr.mxu0 0.0
        %970 = vmatpush1.xpose.msra.mxu0 0.0
        %971 = vmatprep.subr.mxu0 0.0
        %972 = vmatpush1.xpose.msra.mxu0 0.0
        %973 = vmatprep.subr.mxu0 0.0
        %974 = vmatpush1.xpose.msra.mxu0 0.0
        %975 = vmatprep.subr.mxu0 0.0
        %976 = vmatpush1.xpose.msra.mxu0 0.0
        %977 = vmatprep.subr.mxu0 0.0
        %978 = vmatpush1.xpose.msra.mxu0 0.0
        %979 = vmatprep.subr.mxu0 0.0
        %980 = vmatpush1.xpose.msra.mxu0 0.0
        %981 = vmatprep.subr.mxu0 0.0
        %982 = vmatpush1.xpose.msra.mxu0 0.0
        %983 = vmatprep.subr.mxu0 0.0
        %984 = vmatpush1.xpose.msra.mxu0 0.0
        %985 = vmatprep.subr.mxu0 0.0
        %986 = vmatpush1.xpose.msra.mxu0 0.0
        %987 = vmatprep.subr.mxu0 0.0
        %988 = vmatpush1.xpose.msra.mxu0 0.0
        %989 = vmatprep.subr.mxu0 0.0
        %990 = vmatpush1.xpose.msra.mxu0 0.0
        %991 = vmatprep.subr.mxu0 0.0
        %992 = vmatpush1.xpose.msra.mxu0 0.0
        %993 = vmatprep.subr.mxu0 0.0
        %994 = vmatpush1.xpose.msra.mxu0 0.0
        %995 = vmatprep.mubr.f32.mxu0 0.0
        %996 = vmatmul.mubr.f32.gmra.mrb[0].mxu0 %v927
        %v997 = vpop.f32.mrb[0].mxu0
        %v998 = vadd.f32 %v851, %v997
        %v999 = vpop.f32.mrb[0].mxu0
        %1000 = vdwg.mxu0
        %v1001 = vsel %vm852, %v826, 0
        %v1003 = vsel %vm852, %v833, 0
        %1005 = vmatprep.subr.mxu0 0.0
        %1006 = vmatpush1.xpose.msra.mxu0 %v1003
        %1007 = vmatprep.subr.mxu0 0.0
        %1008 = vmatpush1.xpose.msra.mxu0 0.0
        %1009 = vmatprep.subr.mxu0 0.0
        %1010 = vmatpush1.xpose.msra.mxu0 0.0
        %1011 = vmatprep.subr.mxu0 0.0
        %1012 = vmatpush1.xpose.msra.mxu0 0.0
        %1013 = vmatprep.subr.mxu0 0.0
        %1014 = vmatpush1.xpose.msra.mxu0 0.0
        %1015 = vmatprep.subr.mxu0 0.0
        %1016 = vmatpush1.xpose.msra.mxu0 0.0
        %1017 = vmatprep.subr.mxu0 0.0
        %1018 = vmatpush1.xpose.msra.mxu0 0.0
        %1019 = vmatprep.subr.mxu0 0.0
        %1020 = vmatpush1.xpose.msra.mxu0 0.0
        %1021 = vmatprep.subr.mxu0 0.0
        %1022 = vmatpush1.xpose.msra.mxu0 0.0
        %1023 = vmatprep.subr.mxu0 0.0
        %1024 = vmatpush1.xpose.msra.mxu0 0.0
        %1025 = vmatprep.subr.mxu0 0.0
        %1026 = vmatpush1.xpose.msra.mxu0 0.0
        %1027 = vmatprep.subr.mxu0 0.0
        %1028 = vmatpush1.xpose.msra.mxu0 0.0
        %1029 = vmatprep.subr.mxu0 0.0
        %1030 = vmatpush1.xpose.msra.mxu0 0.0
        %1031 = vmatprep.subr.mxu0 0.0
        %1032 = vmatpush1.xpose.msra.mxu0 0.0
        %1033 = vmatprep.subr.mxu0 0.0
        %1034 = vmatpush1.xpose.msra.mxu0 0.0
        %1035 = vmatprep.subr.mxu0 0.0
        %1036 = vmatpush1.xpose.msra.mxu0 0.0
        %1037 = vmatprep.subr.mxu0 0.0
        %1038 = vmatpush1.xpose.msra.mxu0 0.0
        %1039 = vmatprep.subr.mxu0 0.0
        %1040 = vmatpush1.xpose.msra.mxu0 0.0
        %1041 = vmatprep.subr.mxu0 0.0
        %1042 = vmatpush1.xpose.msra.mxu0 0.0
        %1043 = vmatprep.subr.mxu0 0.0
        %1044 = vmatpush1.xpose.msra.mxu0 0.0
        %1045 = vmatprep.subr.mxu0 0.0
        %1046 = vmatpush1.xpose.msra.mxu0 0.0
        %1047 = vmatprep.subr.mxu0 0.0
        %1048 = vmatpush1.xpose.msra.mxu0 0.0
        %1049 = vmatprep.subr.mxu0 0.0
        %1050 = vmatpush1.xpose.msra.mxu0 0.0
        %1051 = vmatprep.subr.mxu0 0.0
        %1052 = vmatpush1.xpose.msra.mxu0 0.0
        %1053 = vmatprep.subr.mxu0 0.0
        %1054 = vmatpush1.xpose.msra.mxu0 0.0
        %1055 = vmatprep.subr.mxu0 0.0
        %1056 = vmatpush1.xpose.msra.mxu0 0.0
        %1057 = vmatprep.subr.mxu0 0.0
        %1058 = vmatpush1.xpose.msra.mxu0 0.0
        %1059 = vmatprep.subr.mxu0 0.0
        %1060 = vmatpush1.xpose.msra.mxu0 0.0
        %1061 = vmatprep.subr.mxu0 0.0
        %1062 = vmatpush1.xpose.msra.mxu0 0.0
        %1063 = vmatprep.subr.mxu0 0.0
        %1064 = vmatpush1.xpose.msra.mxu0 0.0
        %1065 = vmatprep.subr.mxu0 0.0
        %1066 = vmatpush1.xpose.msra.mxu0 0.0
        %1067 = vmatprep.subr.mxu0 0.0
        %1068 = vmatpush1.xpose.msra.mxu0 0.0
        %1069 = vmatprep.mubr.f32.mxu0 0.0
        %1070 = vmatmul.mubr.f32.gmra.mrb[0].mxu0 %v1001
        %v1071 = vpop.f32.mrb[0].mxu0
        %v1072 = vadd.f32 %v851, %v1071
        %v1073 = vpop.f32.mrb[0].mxu0
        %1074 = vdwg.mxu0
        %v1075 = vsel %vm852, %v828, 0
        %v1077 = vsel %vm852, %v835, 0
        %1079 = vmatprep.subr.mxu0 0.0
        %1080 = vmatpush1.xpose.msra.mxu0 %v1077
        %1081 = vmatprep.subr.mxu0 0.0
        %1082 = vmatpush1.xpose.msra.mxu0 0.0
        %1083 = vmatprep.subr.mxu0 0.0
        %1084 = vmatpush1.xpose.msra.mxu0 0.0
        %1085 = vmatprep.subr.mxu0 0.0
        %1086 = vmatpush1.xpose.msra.mxu0 0.0
        %1087 = vmatprep.subr.mxu0 0.0
        %1088 = vmatpush1.xpose.msra.mxu0 0.0
        %1089 = vmatprep.subr.mxu0 0.0
        %1090 = vmatpush1.xpose.msra.mxu0 0.0
        %1091 = vmatprep.subr.mxu0 0.0
        %1092 = vmatpush1.xpose.msra.mxu0 0.0
        %1093 = vmatprep.subr.mxu0 0.0
        %1094 = vmatpush1.xpose.msra.mxu0 0.0
        %1095 = vmatprep.subr.mxu0 0.0
        %1096 = vmatpush1.xpose.msra.mxu0 0.0
        %1097 = vmatprep.subr.mxu0 0.0
        %1098 = vmatpush1.xpose.msra.mxu0 0.0
        %1099 = vmatprep.subr.mxu0 0.0
        %1100 = vmatpush1.xpose.msra.mxu0 0.0
        %1101 = vmatprep.subr.mxu0 0.0
        %1102 = vmatpush1.xpose.msra.mxu0 0.0
        %1103 = vmatprep.subr.mxu0 0.0
        %1104 = vmatpush1.xpose.msra.mxu0 0.0
        %1105 = vmatprep.subr.mxu0 0.0
        %1106 = vmatpush1.xpose.msra.mxu0 0.0
        %1107 = vmatprep.subr.mxu0 0.0
        %1108 = vmatpush1.xpose.msra.mxu0 0.0
        %1109 = vmatprep.subr.mxu0 0.0
        %1110 = vmatpush1.xpose.msra.mxu0 0.0
        %1111 = vmatprep.subr.mxu0 0.0
        %1112 = vmatpush1.xpose.msra.mxu0 0.0
        %1113 = vmatprep.subr.mxu0 0.0
        %1114 = vmatpush1.xpose.msra.mxu0 0.0
        %1115 = vmatprep.subr.mxu0 0.0
        %1116 = vmatpush1.xpose.msra.mxu0 0.0
        %1117 = vmatprep.subr.mxu0 0.0
        %1118 = vmatpush1.xpose.msra.mxu0 0.0
        %1119 = vmatprep.subr.mxu0 0.0
        %1120 = vmatpush1.xpose.msra.mxu0 0.0
        %1121 = vmatprep.subr.mxu0 0.0
        %1122 = vmatpush1.xpose.msra.mxu0 0.0
        %1123 = vmatprep.subr.mxu0 0.0
        %1124 = vmatpush1.xpose.msra.mxu0 0.0
        %1125 = vmatprep.subr.mxu0 0.0
        %1126 = vmatpush1.xpose.msra.mxu0 0.0
        %1127 = vmatprep.subr.mxu0 0.0
        %1128 = vmatpush1.xpose.msra.mxu0 0.0
        %1129 = vmatprep.subr.mxu0 0.0
        %1130 = vmatpush1.xpose.msra.mxu0 0.0
        %1131 = vmatprep.subr.mxu0 0.0
        %1132 = vmatpush1.xpose.msra.mxu0 0.0
        %1133 = vmatprep.subr.mxu0 0.0
        %1134 = vmatpush1.xpose.msra.mxu0 0.0
        %1135 = vmatprep.subr.mxu0 0.0
        %1136 = vmatpush1.xpose.msra.mxu0 0.0
        %1137 = vmatprep.subr.mxu0 0.0
        %1138 = vmatpush1.xpose.msra.mxu0 0.0
        %1139 = vmatprep.subr.mxu0 0.0
        %1140 = vmatpush1.xpose.msra.mxu0 0.0
        %1141 = vmatprep.subr.mxu0 0.0
        %1142 = vmatpush1.xpose.msra.mxu0 0.0
        %1143 = vmatprep.mubr.f32.mxu0 0.0
        %1144 = vmatmul.mubr.f32.gmra.mrb[0].mxu0 %v1075
        %v1145 = vpop.f32.mrb[0].mxu0
        %v1146 = vadd.f32 %v851, %v1145
        %v1147 = vpop.f32.mrb[0].mxu0
        %1148 = vdwg.mxu0
        %vm1149 = vcmask 64512
        %v1150 = vsel %vm1149, %v924, -inf
        %1151 = vmax.xlane.f32.xlu0 %v1150
        %v1152 = vpop.xlane.xlu0 %1151
        %v1153 = vsel %vm1149, %v998, -inf
        %1154 = vmax.xlane.f32.xlu0 %v1153
        %v1155 = vpop.xlane.xlu0 %1154
        %v1156 = vsel %vm1149, %v1072, -inf
        %1157 = vmax.xlane.f32.xlu0 %v1156
        %v1158 = vpop.xlane.xlu0 %1157
        %v1159 = vsel %vm1149, %v1146, -inf
        %1160 = vmax.xlane.f32.xlu0 %v1159
        %v1161 = vpop.xlane.xlu0 %1160
        %v1162 = vsub.f32 %v924, %v1152
        %v1163 = vsub.f32 %v998, %v1155
        %v1164 = vsub.f32 %v1072, %v1158
        %v1165 = vsub.f32 %v1146, %v1161
        %v1166 = vmul.f32 %v1162, 1.442695
        %v1167 = vpow.pop %v1166
        %v1168 = vmul.f32 %v1163, 1.442695
        %v1169 = vpow.pop %v1168
        %v1170 = vmul.f32 %v1164, 1.442695
        %v1171 = vpow.pop %v1170
        %v1172 = vmul.f32 %v1165, 1.442695
        %v1173 = vpow.pop %v1172
        %v1174 = vsel %vm1149, %v1167, 0.0
        %1175 = vadd.xlane.f32.xlu0 %v1174
        %v1176 = vpop.xlane.xlu0 %1175
        %v1177 = vsel %vm1149, %v1169, 0.0
        %1178 = vadd.xlane.f32.xlu0 %v1177
        %v1179 = vpop.xlane.xlu0 %1178
        %v1180 = vsel %vm1149, %v1171, 0.0
        %1181 = vadd.xlane.f32.xlu0 %v1180
        %v1182 = vpop.xlane.xlu0 %1181
        %v1183 = vsel %vm1149, %v1173, 0.0
        %1184 = vadd.xlane.f32.xlu0 %v1183
        %v1185 = vpop.xlane.xlu0 %1184
        %v1187 = vsel %vm1149, %v1167, 0
        %1189 = vmatprep.subr.mxu0 0.0
        %1190 = vmatpush1.msra.mxu0 %v819
        %1191 = vmatprep.subr.mxu0 0.0
        %1192 = vmatpush1.msra.mxu0 0.0
        %1193 = vmatprep.subr.mxu0 0.0
        %1194 = vmatpush1.msra.mxu0 0.0
        %1195 = vmatprep.subr.mxu0 0.0
        %1196 = vmatpush1.msra.mxu0 0.0
        %1197 = vmatprep.subr.mxu0 0.0
        %1198 = vmatpush1.msra.mxu0 0.0
        %1199 = vmatprep.subr.mxu0 0.0
        %1200 = vmatpush1.msra.mxu0 0.0
        %1201 = vmatprep.subr.mxu0 0.0
        %1202 = vmatpush1.msra.mxu0 0.0
        %1203 = vmatprep.subr.mxu0 0.0
        %1204 = vmatpush1.msra.mxu0 0.0
        %1205 = vmatprep.subr.mxu0 0.0
        %1206 = vmatpush1.msra.mxu0 0.0
        %1207 = vmatprep.subr.mxu0 0.0
        %1208 = vmatpush1.msra.mxu0 0.0
        %1209 = vmatprep.subr.mxu0 0.0
        %1210 = vmatpush1.msra.mxu0 0.0
        %1211 = vmatprep.subr.mxu0 0.0
        %1212 = vmatpush1.msra.mxu0 0.0
        %1213 = vmatprep.subr.mxu0 0.0
        %1214 = vmatpush1.msra.mxu0 0.0
        %1215 = vmatprep.subr.mxu0 0.0
        %1216 = vmatpush1.msra.mxu0 0.0
        %1217 = vmatprep.subr.mxu0 0.0
        %1218 = vmatpush1.msra.mxu0 0.0
        %1219 = vmatprep.subr.mxu0 0.0
        %1220 = vmatpush1.msra.mxu0 0.0
        %1221 = vmatprep.subr.mxu0 0.0
        %1222 = vmatpush1.msra.mxu0 0.0
        %1223 = vmatprep.subr.mxu0 0.0
        %1224 = vmatpush1.msra.mxu0 0.0
        %1225 = vmatprep.subr.mxu0 0.0
        %1226 = vmatpush1.msra.mxu0 0.0
        %1227 = vmatprep.subr.mxu0 0.0
        %1228 = vmatpush1.msra.mxu0 0.0
        %1229 = vmatprep.subr.mxu0 0.0
        %1230 = vmatpush1.msra.mxu0 0.0
        %1231 = vmatprep.subr.mxu0 0.0
        %1232 = vmatpush1.msra.mxu0 0.0
        %1233 = vmatprep.subr.mxu0 0.0
        %1234 = vmatpush1.msra.mxu0 0.0
        %1235 = vmatprep.subr.mxu0 0.0
        %1236 = vmatpush1.msra.mxu0 0.0
        %1237 = vmatprep.subr.mxu0 0.0
        %1238 = vmatpush1.msra.mxu0 0.0
        %1239 = vmatprep.subr.mxu0 0.0
        %1240 = vmatpush1.msra.mxu0 0.0
        %1241 = vmatprep.subr.mxu0 0.0
        %1242 = vmatpush1.msra.mxu0 0.0
        %1243 = vmatprep.subr.mxu0 0.0
        %1244 = vmatpush1.msra.mxu0 0.0
        %1245 = vmatprep.subr.mxu0 0.0
        %1246 = vmatpush1.msra.mxu0 0.0
        %1247 = vmatprep.subr.mxu0 0.0
        %1248 = vmatpush1.msra.mxu0 0.0
        %1249 = vmatprep.subr.mxu0 0.0
        %1250 = vmatpush1.msra.mxu0 0.0
        %1251 = vmatprep.subr.mxu0 0.0
        %1252 = vmatpush1.msra.mxu0 0.0
        %1253 = vmatprep.mubr.f32.mxu0 0.0
        %1254 = vmatmul.mubr.f32.gmra.mrb[0].mxu0 %v1187
        %v1255 = vpop.f32.mrb[0].mxu0
        %v1256 = vadd.f32 0.0, %v1255
        %v1257 = vpop.f32.mrb[0].mxu0
        %1258 = vdwg.mxu0
        %v1260 = vsel %vm1149, %v1169, 0
        %1262 = vmatprep.subr.mxu0 0.0
        %1263 = vmatpush1.msra.mxu0 %v838
        %1264 = vmatprep.subr.mxu0 0.0
        %1265 = vmatpush1.msra.mxu0 0.0
        %1266 = vmatprep.subr.mxu0 0.0
        %1267 = vmatpush1.msra.mxu0 0.0
        %1268 = vmatprep.subr.mxu0 0.0
        %1269 = vmatpush1.msra.mxu0 0.0
        %1270 = vmatprep.subr.mxu0 0.0
        %1271 = vmatpush1.msra.mxu0 0.0
        %1272 = vmatprep.subr.mxu0 0.0
        %1273 = vmatpush1.msra.mxu0 0.0
        %1274 = vmatprep.subr.mxu0 0.0
        %1275 = vmatpush1.msra.mxu0 0.0
        %1276 = vmatprep.subr.mxu0 0.0
        %1277 = vmatpush1.msra.mxu0 0.0
        %1278 = vmatprep.subr.mxu0 0.0
        %1279 = vmatpush1.msra.mxu0 0.0
        %1280 = vmatprep.subr.mxu0 0.0
        %1281 = vmatpush1.msra.mxu0 0.0
        %1282 = vmatprep.subr.mxu0 0.0
        %1283 = vmatpush1.msra.mxu0 0.0
        %1284 = vmatprep.subr.mxu0 0.0
        %1285 = vmatpush1.msra.mxu0 0.0
        %1286 = vmatprep.subr.mxu0 0.0
        %1287 = vmatpush1.msra.mxu0 0.0
        %1288 = vmatprep.subr.mxu0 0.0
        %1289 = vmatpush1.msra.mxu0 0.0
        %1290 = vmatprep.subr.mxu0 0.0
        %1291 = vmatpush1.msra.mxu0 0.0
        %1292 = vmatprep.subr.mxu0 0.0
        %1293 = vmatpush1.msra.mxu0 0.0
        %1294 = vmatprep.subr.mxu0 0.0
        %1295 = vmatpush1.msra.mxu0 0.0
        %1296 = vmatprep.subr.mxu0 0.0
        %1297 = vmatpush1.msra.mxu0 0.0
        %1298 = vmatprep.subr.mxu0 0.0
        %1299 = vmatpush1.msra.mxu0 0.0
        %1300 = vmatprep.subr.mxu0 0.0
        %1301 = vmatpush1.msra.mxu0 0.0
        %1302 = vmatprep.subr.mxu0 0.0
        %1303 = vmatpush1.msra.mxu0 0.0
        %1304 = vmatprep.subr.mxu0 0.0
        %1305 = vmatpush1.msra.mxu0 0.0
        %1306 = vmatprep.subr.mxu0 0.0
        %1307 = vmatpush1.msra.mxu0 0.0
        %1308 = vmatprep.subr.mxu0 0.0
        %1309 = vmatpush1.msra.mxu0 0.0
        %1310 = vmatprep.subr.mxu0 0.0
        %1311 = vmatpush1.msra.mxu0 0.0
        %1312 = vmatprep.subr.mxu0 0.0
        %1313 = vmatpush1.msra.mxu0 0.0
        %1314 = vmatprep.subr.mxu0 0.0
        %1315 = vmatpush1.msra.mxu0 0.0
        %1316 = vmatprep.subr.mxu0 0.0
        %1317 = vmatpush1.msra.mxu0 0.0
        %1318 = vmatprep.subr.mxu0 0.0
        %1319 = vmatpush1.msra.mxu0 0.0
        %1320 = vmatprep.subr.mxu0 0.0
        %1321 = vmatpush1.msra.mxu0 0.0
        %1322 = vmatprep.subr.mxu0 0.0
        %1323 = vmatpush1.msra.mxu0 0.0
        %1324 = vmatprep.subr.mxu0 0.0
        %1325 = vmatpush1.msra.mxu0 0.0
        %1326 = vmatprep.mubr.f32.mxu0 0.0
        %1327 = vmatmul.mubr.f32.gmra.mrb[0].mxu0 %v1260
        %v1328 = vpop.f32.mrb[0].mxu0
        %v1329 = vadd.f32 0.0, %v1328
        %v1330 = vpop.f32.mrb[0].mxu0
        %1331 = vdwg.mxu0
        %v1333 = vsel %vm1149, %v1171, 0
        %1335 = vmatprep.subr.mxu0 0.0
        %1336 = vmatpush1.msra.mxu0 %v841
        %1337 = vmatprep.subr.mxu0 0.0
        %1338 = vmatpush1.msra.mxu0 0.0
        %1339 = vmatprep.subr.mxu0 0.0
        %1340 = vmatpush1.msra.mxu0 0.0
        %1341 = vmatprep.subr.mxu0 0.0
        %1342 = vmatpush1.msra.mxu0 0.0
        %1343 = vmatprep.subr.mxu0 0.0
        %1344 = vmatpush1.msra.mxu0 0.0
        %1345 = vmatprep.subr.mxu0 0.0
        %1346 = vmatpush1.msra.mxu0 0.0
        %1347 = vmatprep.subr.mxu0 0.0
        %1348 = vmatpush1.msra.mxu0 0.0
        %1349 = vmatprep.subr.mxu0 0.0
        %1350 = vmatpush1.msra.mxu0 0.0
        %1351 = vmatprep.subr.mxu0 0.0
        %1352 = vmatpush1.msra.mxu0 0.0
        %1353 = vmatprep.subr.mxu0 0.0
        %1354 = vmatpush1.msra.mxu0 0.0
        %1355 = vmatprep.subr.mxu0 0.0
        %1356 = vmatpush1.msra.mxu0 0.0
        %1357 = vmatprep.subr.mxu0 0.0
        %1358 = vmatpush1.msra.mxu0 0.0
        %1359 = vmatprep.subr.mxu0 0.0
        %1360 = vmatpush1.msra.mxu0 0.0
        %1361 = vmatprep.subr.mxu0 0.0
        %1362 = vmatpush1.msra.mxu0 0.0
        %1363 = vmatprep.subr.mxu0 0.0
        %1364 = vmatpush1.msra.mxu0 0.0
        %1365 = vmatprep.subr.mxu0 0.0
        %1366 = vmatpush1.msra.mxu0 0.0
        %1367 = vmatprep.subr.mxu0 0.0
        %1368 = vmatpush1.msra.mxu0 0.0
        %1369 = vmatprep.subr.mxu0 0.0
        %1370 = vmatpush1.msra.mxu0 0.0
        %1371 = vmatprep.subr.mxu0 0.0
        %1372 = vmatpush1.msra.mxu0 0.0
        %1373 = vmatprep.subr.mxu0 0.0
        %1374 = vmatpush1.msra.mxu0 0.0
        %1375 = vmatprep.subr.mxu0 0.0
        %1376 = vmatpush1.msra.mxu0 0.0
        %1377 = vmatprep.subr.mxu0 0.0
        %1378 = vmatpush1.msra.mxu0 0.0
        %1379 = vmatprep.subr.mxu0 0.0
        %1380 = vmatpush1.msra.mxu0 0.0
        %1381 = vmatprep.subr.mxu0 0.0
        %1382 = vmatpush1.msra.mxu0 0.0
        %1383 = vmatprep.subr.mxu0 0.0
        %1384 = vmatpush1.msra.mxu0 0.0
        %1385 = vmatprep.subr.mxu0 0.0
        %1386 = vmatpush1.msra.mxu0 0.0
        %1387 = vmatprep.subr.mxu0 0.0
        %1388 = vmatpush1.msra.mxu0 0.0
        %1389 = vmatprep.subr.mxu0 0.0
        %1390 = vmatpush1.msra.mxu0 0.0
        %1391 = vmatprep.subr.mxu0 0.0
        %1392 = vmatpush1.msra.mxu0 0.0
        %1393 = vmatprep.subr.mxu0 0.0
        %1394 = vmatpush1.msra.mxu0 0.0
        %1395 = vmatprep.subr.mxu0 0.0
        %1396 = vmatpush1.msra.mxu0 0.0
        %1397 = vmatprep.subr.mxu0 0.0
        %1398 = vmatpush1.msra.mxu0 0.0
        %1399 = vmatprep.mubr.f32.mxu0 0.0
        %1400 = vmatmul.mubr.f32.gmra.mrb[0].mxu0 %v1333
        %v1401 = vpop.f32.mrb[0].mxu0
        %v1402 = vadd.f32 0.0, %v1401
        %v1403 = vpop.f32.mrb[0].mxu0
        %1404 = vdwg.mxu0
        %v1406 = vsel %vm1149, %v1173, 0
        %1408 = vmatprep.subr.mxu0 0.0
        %1409 = vmatpush1.msra.mxu0 %v844
        %1410 = vmatprep.subr.mxu0 0.0
        %1411 = vmatpush1.msra.mxu0 0.0
        %1412 = vmatprep.subr.mxu0 0.0
        %1413 = vmatpush1.msra.mxu0 0.0
        %1414 = vmatprep.subr.mxu0 0.0
        %1415 = vmatpush1.msra.mxu0 0.0
        %1416 = vmatprep.subr.mxu0 0.0
        %1417 = vmatpush1.msra.mxu0 0.0
        %1418 = vmatprep.subr.mxu0 0.0
        %1419 = vmatpush1.msra.mxu0 0.0
        %1420 = vmatprep.subr.mxu0 0.0
        %1421 = vmatpush1.msra.mxu0 0.0
        %1422 = vmatprep.subr.mxu0 0.0
        %1423 = vmatpush1.msra.mxu0 0.0
        %1424 = vmatprep.subr.mxu0 0.0
        %1425 = vmatpush1.msra.mxu0 0.0
        %1426 = vmatprep.subr.mxu0 0.0
        %1427 = vmatpush1.msra.mxu0 0.0
        %1428 = vmatprep.subr.mxu0 0.0
        %1429 = vmatpush1.msra.mxu0 0.0
        %1430 = vmatprep.subr.mxu0 0.0
        %1431 = vmatpush1.msra.mxu0 0.0
        %1432 = vmatprep.subr.mxu0 0.0
        %1433 = vmatpush1.msra.mxu0 0.0
        %1434 = vmatprep.subr.mxu0 0.0
        %1435 = vmatpush1.msra.mxu0 0.0
        %1436 = vmatprep.subr.mxu0 0.0
        %1437 = vmatpush1.msra.mxu0 0.0
        %1438 = vmatprep.subr.mxu0 0.0
        %1439 = vmatpush1.msra.mxu0 0.0
        %1440 = vmatprep.subr.mxu0 0.0
        %1441 = vmatpush1.msra.mxu0 0.0
        %1442 = vmatprep.subr.mxu0 0.0
        %1443 = vmatpush1.msra.mxu0 0.0
        %1444 = vmatprep.subr.mxu0 0.0
        %1445 = vmatpush1.msra.mxu0 0.0
        %1446 = vmatprep.subr.mxu0 0.0
        %1447 = vmatpush1.msra.mxu0 0.0
        %1448 = vmatprep.subr.mxu0 0.0
        %1449 = vmatpush1.msra.mxu0 0.0
        %1450 = vmatprep.subr.mxu0 0.0
        %1451 = vmatpush1.msra.mxu0 0.0
        %1452 = vmatprep.subr.mxu0 0.0
        %1453 = vmatpush1.msra.mxu0 0.0
        %1454 = vmatprep.subr.mxu0 0.0
        %1455 = vmatpush1.msra.mxu0 0.0
        %1456 = vmatprep.subr.mxu0 0.0
        %1457 = vmatpush1.msra.mxu0 0.0
        %1458 = vmatprep.subr.mxu0 0.0
        %1459 = vmatpush1.msra.mxu0 0.0
        %1460 = vmatprep.subr.mxu0 0.0
        %1461 = vmatpush1.msra.mxu0 0.0
        %1462 = vmatprep.subr.mxu0 0.0
        %1463 = vmatpush1.msra.mxu0 0.0
        %1464 = vmatprep.subr.mxu0 0.0
        %1465 = vmatpush1.msra.mxu0 0.0
        %1466 = vmatprep.subr.mxu0 0.0
        %1467 = vmatpush1.msra.mxu0 0.0
        %1468 = vmatprep.subr.mxu0 0.0
        %1469 = vmatpush1.msra.mxu0 0.0
        %1470 = vmatprep.subr.mxu0 0.0
        %1471 = vmatpush1.msra.mxu0 0.0
        %1472 = vmatprep.mubr.f32.mxu0 0.0
        %1473 = vmatmul.mubr.f32.gmra.mrb[0].mxu0 %v1406
        %v1474 = vpop.f32.mrb[0].mxu0
        %v1475 = vadd.f32 0.0, %v1474
        %v1476 = vpop.f32.mrb[0].mxu0
        %1477 = vdwg.mxu0
        %v1478 = vrcp.pop %v1176
        %v1479 = vrcp.pop %v1179
        %v1480 = vrcp.pop %v1182
        %v1481 = vrcp.pop %v1185
        %v1482 = vmul.f32 %v1256, %v1478
        %v1483 = vmul.f32 %v1329, %v1479
        %v1484 = vmul.f32 %v1402, %v1480
        %v1485 = vmul.f32 %v1475, %v1481
        %1487 = vrot.lane.b32.xlu0 %v1483, 32
        %v1488 = vpop.permute.xlu0 %1487
        %1491 = vrot.lane.b32.xlu0 %v1484, 64
        %v1492 = vpop.permute.xlu0 %1491
        %1495 = vrot.lane.b32.xlu0 %v1485, 96
        %v1496 = vpop.permute.xlu0 %1495
        %v1498 = vsel %vm852, %v1482, %v1488
        %vm1499 = vcmask 523264
        %v1500 = vsel %vm1499, %v1498, %v1492
        %vm1501 = vcmask 785408
        %v1502 = vsel %vm1501, %v1500, %v1496
        %v1503 = vld [vmem:[#allocation19] sm:$0xff]
        %v1504 = vld [vmem:[#allocation19 + $0x8] sm:$0xff]
        %v1505 = vld [vmem:[#allocation19 + $0x10] sm:$0xff]
        %v1506 = vld [vmem:[#allocation19 + $0x18] sm:$0xff]
        %v1507 = vld [vmem:[#allocation19 + $0x20] sm:$0xff]
        %v1508 = vld [vmem:[#allocation19 + $0x28] sm:$0xff]
        %v1509 = vld [vmem:[#allocation19 + $0x30] sm:$0xff]
        %v1510 = vld [vmem:[#allocation19 + $0x38] sm:$0xff]
        %v1511 = vld [vmem:[#allocation19 + $0x40] sm:$0xff]
        %v1512 = vld [vmem:[#allocation19 + $0x48] sm:$0xff]
        %v1513 = vld [vmem:[#allocation19 + $0x50] sm:$0xff]
        %v1514 = vld [vmem:[#allocation19 + $0x58] sm:$0xff]
        %v1515 = vld [vmem:[#allocation19 + $0x60] sm:$0xff]
        %v1516 = vld [vmem:[#allocation19 + $0x68] sm:$0xff]
        %v1517 = vld [vmem:[#allocation19 + $0x70] sm:$0xff]
        %v1518 = vld [vmem:[#allocation19 + $0x78] sm:$0xff]
        %v1519 = vld [vmem:[#allocation20] sm:$0x1]
        %v1521 = vlaneseq
        %v1522 = vshrl.u32 %v1521, 7
        %v1523 = vsub.s32 0, %v1522
        %v1524 = vrot.slane %v1519, %v1523
        %1526 = vmatprep.subr.mxu0 0.0
        %1527 = vmatpush1.msra.mxu0 %v1503
        %1528 = vmatprep.subr.mxu0 0.0
        %1529 = vmatpush1.msra.mxu0 %v1504
        %1530 = vmatprep.subr.mxu0 0.0
        %1531 = vmatpush1.msra.mxu0 %v1505
        %1532 = vmatprep.subr.mxu0 0.0
        %1533 = vmatpush1.msra.mxu0 %v1506
        %1534 = vmatprep.subr.mxu0 0.0
        %1535 = vmatpush1.msra.mxu0 %v1507
        %1536 = vmatprep.subr.mxu0 0.0
        %1537 = vmatpush1.msra.mxu0 %v1508
        %1538 = vmatprep.subr.mxu0 0.0
        %1539 = vmatpush1.msra.mxu0 %v1509
        %1540 = vmatprep.subr.mxu0 0.0
        %1541 = vmatpush1.msra.mxu0 %v1510
        %1542 = vmatprep.subr.mxu0 0.0
        %1543 = vmatpush1.msra.mxu0 %v1511
        %1544 = vmatprep.subr.mxu0 0.0
        %1545 = vmatpush1.msra.mxu0 %v1512
        %1546 = vmatprep.subr.mxu0 0.0
        %1547 = vmatpush1.msra.mxu0 %v1513
        %1548 = vmatprep.subr.mxu0 0.0
        %1549 = vmatpush1.msra.mxu0 %v1514
        %1550 = vmatprep.subr.mxu0 0.0
        %1551 = vmatpush1.msra.mxu0 %v1515
        %1552 = vmatprep.subr.mxu0 0.0
        %1553 = vmatpush1.msra.mxu0 %v1516
        %1554 = vmatprep.subr.mxu0 0.0
        %1555 = vmatpush1.msra.mxu0 %v1517
        %1556 = vmatprep.subr.mxu0 0.0
        %1557 = vmatpush1.msra.mxu0 %v1518
        %1558 = vmatprep.subr.mxu0 0.0
        %1559 = vmatpush1.msra.mxu0 0.0
        %1560 = vmatprep.subr.mxu0 0.0
        %1561 = vmatpush1.msra.mxu0 0.0
        %1562 = vmatprep.subr.mxu0 0.0
        %1563 = vmatpush1.msra.mxu0 0.0
        %1564 = vmatprep.subr.mxu0 0.0
        %1565 = vmatpush1.msra.mxu0 0.0
        %1566 = vmatprep.subr.mxu0 0.0
        %1567 = vmatpush1.msra.mxu0 0.0
        %1568 = vmatprep.subr.mxu0 0.0
        %1569 = vmatpush1.msra.mxu0 0.0
        %1570 = vmatprep.subr.mxu0 0.0
        %1571 = vmatpush1.msra.mxu0 0.0
        %1572 = vmatprep.subr.mxu0 0.0
        %1573 = vmatpush1.msra.mxu0 0.0
        %1574 = vmatprep.subr.mxu0 0.0
        %1575 = vmatpush1.msra.mxu0 0.0
        %1576 = vmatprep.subr.mxu0 0.0
        %1577 = vmatpush1.msra.mxu0 0.0
        %1578 = vmatprep.subr.mxu0 0.0
        %1579 = vmatpush1.msra.mxu0 0.0
        %1580 = vmatprep.subr.mxu0 0.0
        %1581 = vmatpush1.msra.mxu0 0.0
        %1582 = vmatprep.subr.mxu0 0.0
        %1583 = vmatpush1.msra.mxu0 0.0
        %1584 = vmatprep.subr.mxu0 0.0
        %1585 = vmatpush1.msra.mxu0 0.0
        %1586 = vmatprep.subr.mxu0 0.0
        %1587 = vmatpush1.msra.mxu0 0.0
        %1588 = vmatprep.subr.mxu0 0.0
        %1589 = vmatpush1.msra.mxu0 0.0
        %1590 = vmatprep.mubr.f32.mxu0 0.0
        %1591 = vmatmul.mubr.f32.gmra.mrb[0].mxu0 %v1502
        %v1592 = vpop.f32.mrb[0].mxu0
        %v1593 = vadd.f32 %v1524, %v1592
        %v1594 = vpop.f32.mrb[0].mxu0
        %1595 = vdwg.mxu0
        %v1596 = vadd.f32 %v573, %v1593
        %1597 = vst [vmem:[%s572] sm:$0xff] %v1596
        %s1598 = sand.u32 %s300, 1
        %s1599 = scalar_lea.sflag [#allocation4], %s1598
        %s1600 = sand.u32 %s300, 1
        %s1601 = smul.addr %s1600, 8
        %s1602 = scalar_lea.vmem [#allocation22], %s1601
        // Predicated region
        $region117: #{tpu_custom_call.1} parent=67 // pred_check
          %p1603 = pneg %p310
        $region118: #{tpu_custom_call.1} parent=67 // pred_check_branch
          %1605 = sbr.rel (%p1603) target = $region120
        $region119: #{tpu_custom_call.1} parent=67 // pred_region
          %s1607 = ssub.s32 128, 128
          %1608 = vsyncadd %s1599, %s1607
          %s1609 = smul.addr %s35, 128
          %s1610 = scalar_lea.hbm %s12, %s1609
          %s1612 = sshll.u32 %s1602, 4
          %s1613 = int_to_ptr.vmem [resolvable:$true] %s1612
          %1615 = dma.vmem_to_hbm [thread:$0]  %s1613, 128, %s1610, %s1599
        $region120: #{tpu_custom_call.1} parent=67 // pred_fallthru
          _
      $region68: #{tpu_custom_call.1} parent=5 // pred_fallthru
        _
      %p1616 = scmp.le.s32.totalorder 2, %s30
      // Predicated region
      $region121: #{tpu_custom_call.1} parent=5 // pred_check
        %p1617 = pneg %p1616
      $region122: #{tpu_custom_call.1} parent=5 // pred_check_branch
        %1619 = sbr.rel (%p1617) target = $region124
      $region123: #{tpu_custom_call.1} parent=5 // pred_region
        %s1620 = ssub.s32 %s30, 2
        // Predicated region
        $region125: #{tpu_custom_call.1} parent=123 // pred_check
          %p1621 = pneg %p316
        $region126: #{tpu_custom_call.1} parent=123 // pred_check_branch
          %1623 = sbr.rel (%p1621) target = $region128
        $region127: #{tpu_custom_call.1} parent=123 // pred_region
          %s1624 = sand.u32 %s301, 1
          %s1625 = scalar_lea.sflag [#allocation4], %s1624
          %s1626 = sand.u32 %s301, 1
          %s1627 = smul.addr %s1626, 8
          %s1628 = scalar_lea.vmem [#allocation22], %s1627
          %1629 = dma.done %s1625, 128
        $region128: #{tpu_custom_call.1} parent=123 // pred_fallthru
          _
      $region124: #{tpu_custom_call.1} parent=5 // pred_fallthru
        _
    $region6: #{tpu_custom_call.1} parent=1 // loop_footer
      %s34 = sadd.s32 1, %s30
    $region7: #{tpu_custom_call.1} parent=1 // loop_footer_branch
      %29 = sbr.rel target = $region3
    $region8: #{tpu_custom_call.1} parent=1 // loop_exit
      _
    %1630 = vsyncpa [#allocation3], 1
    %s1631 = scalar_lea.sflag [#allocation3], 1
    %1632 = vsyncpa %s1631, 1
    %1633 = vsyncpa [#allocation6], 1
    %1634 = vsyncpa [#allocation9], 1
    %1635 = vsyncpa [#allocation12], 1
    %1636 = vsyncpa [#allocation15], 1
    %1637 = vsyncpa [#allocation18], 1
    %1638 = vsyncpa [#allocation21], 1
    %1639 = vsyncpa [#allocation4], 1
    %s1640 = scalar_lea.sflag [#allocation4], 1
    %1641 = vsyncpa %s1640, 1

</llo_original>
